<compile_context>
chip_gen: v5e
topology: v5e:2x2
jax: 0.10.0
libtpu: 0.0.40
codegen_flags: <defaults>
</compile_context>

<pallas_src>
import functools

import jax
import jax.numpy as jnp
from jax.experimental import pallas as pl
from jax.experimental.pallas import tpu as pltpu

DILATIONS = (6, 12, 18)


# ----------------------------------------------------------------------------
# Fused Pallas kernel
# ----------------------------------------------------------------------------
def _fused_dwaspp_kernel(x_ref, m_ref, w1_ref, b1_ref, wdw_ref, bdw_ref,
                         wpw_ref, bpw_ref, wo_ref, bo_ref, o_ref,
                         *, H, W, dilations, pad):
    """Fused DWASPPLite block for one image.

    Layout: activations are (channels, H*W) -> channels on sublanes, flattened
    spatial on the 128-wide lane axis.

    x_ref : (1, Cin, H*W + 2*pad)     flat-padded input image
    m_ref : (9*len(dilations), H*W)   0/1 boundary masks per (dilation, tap)
    w1_ref: (aspp, Cin)   b1_ref: (aspp, 1)            conv1x1  (BN folded)
    wdw_ref: (B, Cin, 9)  bdw_ref: (B, Cin, 1)         depthwise 3x3 taps
    wpw_ref: (B, aspp, Cin)  bpw_ref: (B, aspp, 1)     per-branch pointwise
    wo_ref: (out, (B+1)*aspp)  bo_ref: (out, 1)        output 1x1 conv
    o_ref : (1, out, H*W)
    """
    HW = H * W
    aspp = w1_ref.shape[0]
    cin = x_ref.shape[1]

    # Center (unshifted) view of the input.
    x = x_ref[0, :, pl.ds(pad, HW)]                                   # (Cin, HW)

    # Branch 0: 1x1 conv + ReLU, immediately folded into the output conv.
    x1 = jnp.maximum(
        jnp.dot(w1_ref[...], x, preferred_element_type=jnp.float32) + b1_ref[...],
        0.0)                                                          # (aspp, HW)
    acc = jnp.dot(wo_ref[:, pl.ds(0, aspp)], x1,
                  preferred_element_type=jnp.float32)                 # (out, HW)

    # ASPP branches: dilated depthwise 3x3 + pointwise, accumulated into `acc`.
    for br, d in enumerate(dilations):
        dw_acc = jnp.zeros((cin, HW), jnp.float32)
        for i in range(3):
            for j in range(3):
                t = i * 3 + j
                off = (i - 1) * d * W + (j - 1) * d                   # flat tap shift
                shifted = x_ref[0, :, pl.ds(pad + off, HW)]           # (Cin, HW)
                mask = m_ref[pl.ds(br * 9 + t, 1), :]                 # (1, HW)
                tapw = wdw_ref[br, :, pl.ds(t, 1)]                    # (Cin, 1)
                dw_acc = dw_acc + tapw * (shifted * mask)
        dw_act = jnp.maximum(dw_acc + bdw_ref[br], 0.0)               # (Cin, HW)
        pw_act = jnp.maximum(
            jnp.dot(wpw_ref[br], dw_act, preferred_element_type=jnp.float32)
            + bpw_ref[br], 0.0)                                       # (aspp, HW)
        acc = acc + jnp.dot(wo_ref[:, pl.ds((br + 1) * aspp, aspp)], pw_act,
                            preferred_element_type=jnp.float32)

    o_ref[0] = jnp.maximum(acc + bo_ref[...], 0.0).astype(o_ref.dtype)


def _make_tap_masks(H, W, dilations):
    """0/1 mask per (dilation, 3x3 tap): output pixels whose dilated tap lands
    inside the HxW image (zero-padding boundary handling)."""
    hh = jnp.arange(H, dtype=jnp.int32).reshape(H, 1)
    ww = jnp.arange(W, dtype=jnp.int32).reshape(1, W)
    rows = []
    for d in dilations:
        for i in range(3):
            for j in range(3):
                hv = (hh + (i - 1) * d >= 0) & (hh + (i - 1) * d < H)
                wv = (ww + (j - 1) * d >= 0) & (ww + (j - 1) * d < W)
                rows.append((hv & wv).astype(jnp.float32).reshape(H * W))
    return jnp.stack(rows, axis=0)                                    # (9*n_dil, H*W)


def dwaspp_lite_fused(x_nchw, params):
    N, Cin, H, W = x_nchw.shape
    HW = H * W
    aspp = params["c1_w"].shape[0]
    out_chs = params["out_w"].shape[0]
    n_br = len(DILATIONS)
    pad = max(DILATIONS) * (W + 1)        # max |flattened tap offset| over all dilations
    HWp = HW + 2 * pad

    # Pad the flattened spatial axis ONCE (covers all three dilations).
    x_flat = x_nchw.reshape(N, Cin, HW)   # NCHW with flattened spatial == (C, H*W) layout
    x_pad = jnp.pad(x_flat, ((0, 0), (0, 0), (pad, pad)))

    masks = _make_tap_masks(H, W, DILATIONS)                          # (9*n_br, HW)

    # Weight packing (BN already folded).
    w1 = params["c1_w"].reshape(aspp, Cin)
    b1 = params["c1_b"].reshape(aspp, 1)
    wdw = jnp.stack([params[f"b{i}_dw_w"].reshape(Cin, 9) for i in range(n_br)])
    bdw = jnp.stack([params[f"b{i}_dw_b"].reshape(Cin, 1) for i in range(n_br)])
    wpw = jnp.stack([params[f"b{i}_pw_w"].reshape(aspp, Cin) for i in range(n_br)])
    bpw = jnp.stack([params[f"b{i}_pw_b"].reshape(aspp, 1) for i in range(n_br)])
    wo = params["out_w"].reshape(out_chs, (n_br + 1) * aspp)
    bo = params["out_b"].reshape(out_chs, 1)

    kernel = functools.partial(_fused_dwaspp_kernel, H=H, W=W,
                               dilations=DILATIONS, pad=pad)

    # TODO(synk): for large H*W, add a second "parallel" grid axis tiling the flat
    # spatial dim (with a pad-sized halo) so tiles stay under v7x's 64 MiB VMEM and
    # both TensorCores get many blocks.
    out = pl.pallas_call(
        kernel,
        out_shape=jax.ShapeDtypeStruct((N, out_chs, HW), jnp.float32),
        grid=(N,),
        in_specs=[
            pl.BlockSpec((1, Cin, HWp), lambda n: (n, 0, 0)),
            pl.BlockSpec((9 * n_br, HW), lambda n: (0, 0)),
            pl.BlockSpec((aspp, Cin), lambda n: (0, 0)),
            pl.BlockSpec((aspp, 1), lambda n: (0, 0)),
            pl.BlockSpec((n_br, Cin, 9), lambda n: (0, 0, 0)),
            pl.BlockSpec((n_br, Cin, 1), lambda n: (0, 0, 0)),
            pl.BlockSpec((n_br, aspp, Cin), lambda n: (0, 0, 0)),
            pl.BlockSpec((n_br, aspp, 1), lambda n: (0, 0, 0)),
            pl.BlockSpec((out_chs, (n_br + 1) * aspp), lambda n: (0, 0)),
            pl.BlockSpec((out_chs, 1), lambda n: (0, 0)),
        ],
        out_specs=pl.BlockSpec((1, out_chs, HW), lambda n: (n, 0, 0)),
        compiler_params=pltpu.CompilerParams(
            dimension_semantics=("parallel",),
            vmem_limit_bytes=32 * 1024 * 1024,
        ),
    )(x_pad, masks, w1, b1, wdw, bdw, wpw, bpw, wo, bo)

    return out.reshape(N, out_chs, H, W)


@jax.jit
def dwaspp_lite_forward(x_nchw, params):
    return dwaspp_lite_fused(x_nchw, params)


# ----------------------------------------------------------------------------
# Parameter construction (deterministic, synthetic) with eval-mode BN folding
# ----------------------------------------------------------------------------
def _fold_bn(w, b, gamma, beta, mean, var, eps=1e-5):
    scale = gamma / jnp.sqrt(var + eps)                       # (Cout,)
    w_f = w * scale.reshape((-1,) + (1,) * (w.ndim - 1))      # scale out-channel dim
    b_f = (b - mean) * scale + beta
    return w_f, b_f


def _init_conv_bn(key, cout, cin, kh, kw):
    ks = jax.random.split(key, 6)
    w = 0.1 * jax.random.normal(ks[0], (cout, cin, kh, kw), jnp.float32)
    b = 0.05 * jax.random.normal(ks[1], (cout,), jnp.float32)
    gamma = 1.0 + 0.1 * jax.random.normal(ks[2], (cout,), jnp.float32)
    beta = 0.05 * jax.random.normal(ks[3], (cout,), jnp.float32)
    mean = 0.1 * jax.random.normal(ks[4], (cout,), jnp.float32)
    var = jnp.abs(jax.random.normal(ks[5], (cout,), jnp.float32)) + 0.5
    return _fold_bn(w, b, gamma, beta, mean, var)


def make_params(key, in_chs, aspp_chs, out_chs):
    keys = jax.random.split(key, 8)
    p = {}
    p["c1_w"], p["c1_b"] = _init_conv_bn(keys[0], aspp_chs, in_chs, 1, 1)
    for i in range(3):
        p[f"b{i}_dw_w"], p[f"b{i}_dw_b"] = _init_conv_bn(keys[1 + 2 * i], in_chs, 1, 3, 3)
        p[f"b{i}_pw_w"], p[f"b{i}_pw_b"] = _init_conv_bn(keys[2 + 2 * i], aspp_chs, in_chs, 1, 1)
    p["out_w"], p["out_b"] = _init_conv_bn(keys[7], out_chs, 4 * aspp_chs, 1, 1)
    return p


# ----------------------------------------------------------------------------
# Pure-JAX reference for verification
# ----------------------------------------------------------------------------
def _ref_forward(x_nchw, params):
    relu = lambda v: jnp.maximum(v, 0.0)
    dn = ("NCHW", "OIHW", "NCHW")

    def pw(x, w, b):
        y = jax.lax.conv_general_dilated(x, w, (1, 1), "VALID", dimension_numbers=dn)
        return relu(y + b.reshape(1, -1, 1, 1))

    def dw(x, w, b, d):
        C = x.shape[1]
        y = jax.lax.conv_general_dilated(
            x, w, (1, 1), [(d, d), (d, d)], rhs_dilation=(d, d),
            feature_group_count=C, dimension_numbers=dn)
        return relu(y + b.reshape(1, -1, 1, 1))

    x1 = pw(x_nchw, params["c1_w"], params["c1_b"])
    branches = [x1]
    for i, d in enumerate(DILATIONS):
        h = dw(x_nchw, params[f"b{i}_dw_w"], params[f"b{i}_dw_b"], d)
        branches.append(pw(h, params[f"b{i}_pw_w"], params[f"b{i}_pw_b"]))
    cat = jnp.concatenate(branches, axis=1)
    # Dropout2d(p=0.2) is identity in eval mode.
    return pw(cat, params["out_w"], params["out_b"])


# ----------------------------------------------------------------------------
if __name__ == "__main__":
    N, in_chs, H, W = 2, 4, 16, 16
    aspp_chs, out_chs = 8, 8

    key = jax.random.PRNGKey(0)
    kx, kp = jax.random.split(key)
    x = jax.random.normal(kx, (N, in_chs, H, W), jnp.float32)   # NCHW, like PyTorch
    params = make_params(kp, in_chs, aspp_chs, out_chs)

    out = dwaspp_lite_forward(x, params)
    out = jax.block_until_ready(out)
    assert out.shape == (N, out_chs, H, W), out.shape

    ref = _ref_forward(x, params)
    assert jnp.allclose(out, ref, rtol=1e-4, atol=1e-4), float(jnp.max(jnp.abs(out - ref)))

    print("KERNEL_OK")
</pallas_src>

<mosaic_0001>
module attributes {stable_mosaic.version = 11 : i64} {
  func.func @_fused_dwaspp_kernel(%arg0: i32, %arg1: memref<1x4x868xf32, #tpu.memory_space<vmem>>, %arg2: memref<27x256xf32, #tpu.memory_space<vmem>>, %arg3: memref<8x4xf32, #tpu.memory_space<vmem>>, %arg4: memref<8x1xf32, #tpu.memory_space<vmem>>, %arg5: memref<3x4x9xf32, #tpu.memory_space<vmem>>, %arg6: memref<3x4x1xf32, #tpu.memory_space<vmem>>, %arg7: memref<3x8x4xf32, #tpu.memory_space<vmem>>, %arg8: memref<3x8x1xf32, #tpu.memory_space<vmem>>, %arg9: memref<8x32xf32, #tpu.memory_space<vmem>>, %arg10: memref<8x1xf32, #tpu.memory_space<vmem>>, %arg11: memref<1x8x256xf32, #tpu.memory_space<vmem>>) attributes {dimension_semantics = [#tpu.dimension_semantics<parallel>], iteration_bounds = array<i64: 2>, scalar_prefetch = 0 : i64, scratch_operands = 0 : i64, tpu.core_type = #tpu.core_type<tc>, window_params = [{transform_indices = @transform_0, window_bounds = array<i64: 1, 4, 868>}, {pipeline_mode = #tpu.pipeline_mode<synchronous>, transform_indices = @transform_1, window_bounds = array<i64: 27, 256>}, {pipeline_mode = #tpu.pipeline_mode<synchronous>, transform_indices = @transform_2, window_bounds = array<i64: 8, 4>}, {pipeline_mode = #tpu.pipeline_mode<synchronous>, transform_indices = @transform_3, window_bounds = array<i64: 8, 1>}, {pipeline_mode = #tpu.pipeline_mode<synchronous>, transform_indices = @transform_4, window_bounds = array<i64: 3, 4, 9>}, {pipeline_mode = #tpu.pipeline_mode<synchronous>, transform_indices = @transform_5, window_bounds = array<i64: 3, 4, 1>}, {pipeline_mode = #tpu.pipeline_mode<synchronous>, transform_indices = @transform_6, window_bounds = array<i64: 3, 8, 4>}, {pipeline_mode = #tpu.pipeline_mode<synchronous>, transform_indices = @transform_7, window_bounds = array<i64: 3, 8, 1>}, {pipeline_mode = #tpu.pipeline_mode<synchronous>, transform_indices = @transform_8, window_bounds = array<i64: 8, 32>}, {pipeline_mode = #tpu.pipeline_mode<synchronous>, transform_indices = @transform_9, window_bounds = array<i64: 8, 1>}, {transform_indices = @transform_10, window_bounds = array<i64: 1, 8, 256>}]} {
    %c0 = arith.constant 0 : index
    %c0_0 = arith.constant 0 : index
    %c306 = arith.constant 306 : index
    %0 = vector.load %arg1[%c0, %c0_0, %c306] : memref<1x4x868xf32, #tpu.memory_space<vmem>>, vector<1x4x256xf32>
    %1 = vector.shape_cast %0 : vector<1x4x256xf32> to vector<4x256xf32>
    %c0_1 = arith.constant 0 : index
    %c0_2 = arith.constant 0 : index
    %2 = vector.load %arg3[%c0_1, %c0_2] : memref<8x4xf32, #tpu.memory_space<vmem>>, vector<8x4xf32>
    %cst = arith.constant dense<0.000000e+00> : vector<8x256xf32>
    %3 = tpu.matmul %2, %1, %cst {dimension_numbers = #tpu.dot_dimension_numbers<[1], [0], [0], [1], [0, 0, 1, 1], [], []>} : vector<8x4xf32>, vector<4x256xf32>, vector<8x256xf32> -> vector<8x256xf32>
    %c0_3 = arith.constant 0 : index
    %c0_4 = arith.constant 0 : index
    %4 = vector.load %arg4[%c0_3, %c0_4] : memref<8x1xf32, #tpu.memory_space<vmem>>, vector<8x1xf32>
    %5 = vector.broadcast %4 : vector<8x1xf32> to vector<8x256xf32>
    %6 = arith.addf %3, %5 : vector<8x256xf32>
    %cst_5 = arith.constant 0.000000e+00 : f32
    %7 = vector.broadcast %cst_5 : f32 to vector<8x256xf32>
    %8 = arith.maximumf %6, %7 : vector<8x256xf32>
    %c0_6 = arith.constant 0 : index
    %c0_7 = arith.constant 0 : index
    %9 = vector.load %arg9[%c0_6, %c0_7] : memref<8x32xf32, #tpu.memory_space<vmem>>, vector<8x8xf32>
    %cst_8 = arith.constant dense<0.000000e+00> : vector<8x256xf32>
    %10 = tpu.matmul %9, %8, %cst_8 {dimension_numbers = #tpu.dot_dimension_numbers<[1], [0], [0], [1], [0, 0, 1, 1], [], []>} : vector<8x8xf32>, vector<8x256xf32>, vector<8x256xf32> -> vector<8x256xf32>
    %cst_9 = arith.constant 0.000000e+00 : f32
    %11 = vector.broadcast %cst_9 : f32 to vector<4x256xf32>
    %c0_10 = arith.constant 0 : index
    %c0_11 = arith.constant 0 : index
    %c204 = arith.constant 204 : index
    %12 = vector.load %arg1[%c0_10, %c0_11, %c204] : memref<1x4x868xf32, #tpu.memory_space<vmem>>, vector<1x4x256xf32>
    %13 = vector.shape_cast %12 : vector<1x4x256xf32> to vector<4x256xf32>
    %c0_12 = arith.constant 0 : index
    %c0_13 = arith.constant 0 : index
    %14 = vector.load %arg2[%c0_12, %c0_13] : memref<27x256xf32, #tpu.memory_space<vmem>>, vector<1x256xf32>
    %c0_14 = arith.constant 0 : index
    %c0_15 = arith.constant 0 : index
    %c0_16 = arith.constant 0 : index
    %15 = vector.load %arg5[%c0_14, %c0_15, %c0_16] : memref<3x4x9xf32, #tpu.memory_space<vmem>>, vector<1x4x1xf32>
    %16 = vector.shape_cast %15 : vector<1x4x1xf32> to vector<4x1xf32>
    %17 = vector.broadcast %14 : vector<1x256xf32> to vector<4x256xf32>
    %18 = arith.mulf %13, %17 : vector<4x256xf32>
    %19 = vector.broadcast %16 : vector<4x1xf32> to vector<4x256xf32>
    %20 = arith.mulf %19, %18 : vector<4x256xf32>
    %21 = arith.addf %11, %20 : vector<4x256xf32>
    %c0_17 = arith.constant 0 : index
    %c0_18 = arith.constant 0 : index
    %c210 = arith.constant 210 : index
    %22 = vector.load %arg1[%c0_17, %c0_18, %c210] : memref<1x4x868xf32, #tpu.memory_space<vmem>>, vector<1x4x256xf32>
    %23 = vector.shape_cast %22 : vector<1x4x256xf32> to vector<4x256xf32>
    %c1 = arith.constant 1 : index
    %c0_19 = arith.constant 0 : index
    %24 = vector.load %arg2[%c1, %c0_19] : memref<27x256xf32, #tpu.memory_space<vmem>>, vector<1x256xf32>
    %c0_20 = arith.constant 0 : index
    %c0_21 = arith.constant 0 : index
    %c1_22 = arith.constant 1 : index
    %25 = vector.load %arg5[%c0_20, %c0_21, %c1_22] : memref<3x4x9xf32, #tpu.memory_space<vmem>>, vector<1x4x1xf32>
    %26 = vector.shape_cast %25 : vector<1x4x1xf32> to vector<4x1xf32>
    %27 = vector.broadcast %24 : vector<1x256xf32> to vector<4x256xf32>
    %28 = arith.mulf %23, %27 : vector<4x256xf32>
    %29 = vector.broadcast %26 : vector<4x1xf32> to vector<4x256xf32>
    %30 = arith.mulf %29, %28 : vector<4x256xf32>
    %31 = arith.addf %21, %30 : vector<4x256xf32>
    %c0_23 = arith.constant 0 : index
    %c0_24 = arith.constant 0 : index
    %c216 = arith.constant 216 : index
    %32 = vector.load %arg1[%c0_23, %c0_24, %c216] : memref<1x4x868xf32, #tpu.memory_space<vmem>>, vector<1x4x256xf32>
    %33 = vector.shape_cast %32 : vector<1x4x256xf32> to vector<4x256xf32>
    %c2 = arith.constant 2 : index
    %c0_25 = arith.constant 0 : index
    %34 = vector.load %arg2[%c2, %c0_25] : memref<27x256xf32, #tpu.memory_space<vmem>>, vector<1x256xf32>
    %c0_26 = arith.constant 0 : index
    %c0_27 = arith.constant 0 : index
    %c2_28 = arith.constant 2 : index
    %35 = vector.load %arg5[%c0_26, %c0_27, %c2_28] : memref<3x4x9xf32, #tpu.memory_space<vmem>>, vector<1x4x1xf32>
    %36 = vector.shape_cast %35 : vector<1x4x1xf32> to vector<4x1xf32>
    %37 = vector.broadcast %34 : vector<1x256xf32> to vector<4x256xf32>
    %38 = arith.mulf %33, %37 : vector<4x256xf32>
    %39 = vector.broadcast %36 : vector<4x1xf32> to vector<4x256xf32>
    %40 = arith.mulf %39, %38 : vector<4x256xf32>
    %41 = arith.addf %31, %40 : vector<4x256xf32>
    %c0_29 = arith.constant 0 : index
    %c0_30 = arith.constant 0 : index
    %c300 = arith.constant 300 : index
    %42 = vector.load %arg1[%c0_29, %c0_30, %c300] : memref<1x4x868xf32, #tpu.memory_space<vmem>>, vector<1x4x256xf32>
    %43 = vector.shape_cast %42 : vector<1x4x256xf32> to vector<4x256xf32>
    %c3 = arith.constant 3 : index
    %c0_31 = arith.constant 0 : index
    %44 = vector.load %arg2[%c3, %c0_31] : memref<27x256xf32, #tpu.memory_space<vmem>>, vector<1x256xf32>
    %c0_32 = arith.constant 0 : index
    %c0_33 = arith.constant 0 : index
    %c3_34 = arith.constant 3 : index
    %45 = vector.load %arg5[%c0_32, %c0_33, %c3_34] : memref<3x4x9xf32, #tpu.memory_space<vmem>>, vector<1x4x1xf32>
    %46 = vector.shape_cast %45 : vector<1x4x1xf32> to vector<4x1xf32>
    %47 = vector.broadcast %44 : vector<1x256xf32> to vector<4x256xf32>
    %48 = arith.mulf %43, %47 : vector<4x256xf32>
    %49 = vector.broadcast %46 : vector<4x1xf32> to vector<4x256xf32>
    %50 = arith.mulf %49, %48 : vector<4x256xf32>
    %51 = arith.addf %41, %50 : vector<4x256xf32>
    %c0_35 = arith.constant 0 : index
    %c0_36 = arith.constant 0 : index
    %c306_37 = arith.constant 306 : index
    %52 = vector.load %arg1[%c0_35, %c0_36, %c306_37] : memref<1x4x868xf32, #tpu.memory_space<vmem>>, vector<1x4x256xf32>
    %53 = vector.shape_cast %52 : vector<1x4x256xf32> to vector<4x256xf32>
    %c4 = arith.constant 4 : index
    %c0_38 = arith.constant 0 : index
    %54 = vector.load %arg2[%c4, %c0_38] : memref<27x256xf32, #tpu.memory_space<vmem>>, vector<1x256xf32>
    %c0_39 = arith.constant 0 : index
    %c0_40 = arith.constant 0 : index
    %c4_41 = arith.constant 4 : index
    %55 = vector.load %arg5[%c0_39, %c0_40, %c4_41] : memref<3x4x9xf32, #tpu.memory_space<vmem>>, vector<1x4x1xf32>
    %56 = vector.shape_cast %55 : vector<1x4x1xf32> to vector<4x1xf32>
    %57 = vector.broadcast %54 : vector<1x256xf32> to vector<4x256xf32>
    %58 = arith.mulf %53, %57 : vector<4x256xf32>
    %59 = vector.broadcast %56 : vector<4x1xf32> to vector<4x256xf32>
    %60 = arith.mulf %59, %58 : vector<4x256xf32>
    %61 = arith.addf %51, %60 : vector<4x256xf32>
    %c0_42 = arith.constant 0 : index
    %c0_43 = arith.constant 0 : index
    %c312 = arith.constant 312 : index
    %62 = vector.load %arg1[%c0_42, %c0_43, %c312] : memref<1x4x868xf32, #tpu.memory_space<vmem>>, vector<1x4x256xf32>
    %63 = vector.shape_cast %62 : vector<1x4x256xf32> to vector<4x256xf32>
    %c5 = arith.constant 5 : index
    %c0_44 = arith.constant 0 : index
    %64 = vector.load %arg2[%c5, %c0_44] : memref<27x256xf32, #tpu.memory_space<vmem>>, vector<1x256xf32>
    %c0_45 = arith.constant 0 : index
    %c0_46 = arith.constant 0 : index
    %c5_47 = arith.constant 5 : index
    %65 = vector.load %arg5[%c0_45, %c0_46, %c5_47] : memref<3x4x9xf32, #tpu.memory_space<vmem>>, vector<1x4x1xf32>
    %66 = vector.shape_cast %65 : vector<1x4x1xf32> to vector<4x1xf32>
    %67 = vector.broadcast %64 : vector<1x256xf32> to vector<4x256xf32>
    %68 = arith.mulf %63, %67 : vector<4x256xf32>
    %69 = vector.broadcast %66 : vector<4x1xf32> to vector<4x256xf32>
    %70 = arith.mulf %69, %68 : vector<4x256xf32>
    %71 = arith.addf %61, %70 : vector<4x256xf32>
    %c0_48 = arith.constant 0 : index
    %c0_49 = arith.constant 0 : index
    %c396 = arith.constant 396 : index
    %72 = vector.load %arg1[%c0_48, %c0_49, %c396] : memref<1x4x868xf32, #tpu.memory_space<vmem>>, vector<1x4x256xf32>
    %73 = vector.shape_cast %72 : vector<1x4x256xf32> to vector<4x256xf32>
    %c6 = arith.constant 6 : index
    %c0_50 = arith.constant 0 : index
    %74 = vector.load %arg2[%c6, %c0_50] : memref<27x256xf32, #tpu.memory_space<vmem>>, vector<1x256xf32>
    %c0_51 = arith.constant 0 : index
    %c0_52 = arith.constant 0 : index
    %c6_53 = arith.constant 6 : index
    %75 = vector.load %arg5[%c0_51, %c0_52, %c6_53] : memref<3x4x9xf32, #tpu.memory_space<vmem>>, vector<1x4x1xf32>
    %76 = vector.shape_cast %75 : vector<1x4x1xf32> to vector<4x1xf32>
    %77 = vector.broadcast %74 : vector<1x256xf32> to vector<4x256xf32>
    %78 = arith.mulf %73, %77 : vector<4x256xf32>
    %79 = vector.broadcast %76 : vector<4x1xf32> to vector<4x256xf32>
    %80 = arith.mulf %79, %78 : vector<4x256xf32>
    %81 = arith.addf %71, %80 : vector<4x256xf32>
    %c0_54 = arith.constant 0 : index
    %c0_55 = arith.constant 0 : index
    %c402 = arith.constant 402 : index
    %82 = vector.load %arg1[%c0_54, %c0_55, %c402] : memref<1x4x868xf32, #tpu.memory_space<vmem>>, vector<1x4x256xf32>
    %83 = vector.shape_cast %82 : vector<1x4x256xf32> to vector<4x256xf32>
    %c7 = arith.constant 7 : index
    %c0_56 = arith.constant 0 : index
    %84 = vector.load %arg2[%c7, %c0_56] : memref<27x256xf32, #tpu.memory_space<vmem>>, vector<1x256xf32>
    %c0_57 = arith.constant 0 : index
    %c0_58 = arith.constant 0 : index
    %c7_59 = arith.constant 7 : index
    %85 = vector.load %arg5[%c0_57, %c0_58, %c7_59] : memref<3x4x9xf32, #tpu.memory_space<vmem>>, vector<1x4x1xf32>
    %86 = vector.shape_cast %85 : vector<1x4x1xf32> to vector<4x1xf32>
    %87 = vector.broadcast %84 : vector<1x256xf32> to vector<4x256xf32>
    %88 = arith.mulf %83, %87 : vector<4x256xf32>
    %89 = vector.broadcast %86 : vector<4x1xf32> to vector<4x256xf32>
    %90 = arith.mulf %89, %88 : vector<4x256xf32>
    %91 = arith.addf %81, %90 : vector<4x256xf32>
    %c0_60 = arith.constant 0 : index
    %c0_61 = arith.constant 0 : index
    %c408 = arith.constant 408 : index
    %92 = vector.load %arg1[%c0_60, %c0_61, %c408] : memref<1x4x868xf32, #tpu.memory_space<vmem>>, vector<1x4x256xf32>
    %93 = vector.shape_cast %92 : vector<1x4x256xf32> to vector<4x256xf32>
    %c8 = arith.constant 8 : index
    %c0_62 = arith.constant 0 : index
    %94 = vector.load %arg2[%c8, %c0_62] : memref<27x256xf32, #tpu.memory_space<vmem>>, vector<1x256xf32>
    %c0_63 = arith.constant 0 : index
    %c0_64 = arith.constant 0 : index
    %c8_65 = arith.constant 8 : index
    %95 = vector.load %arg5[%c0_63, %c0_64, %c8_65] : memref<3x4x9xf32, #tpu.memory_space<vmem>>, vector<1x4x1xf32>
    %96 = vector.shape_cast %95 : vector<1x4x1xf32> to vector<4x1xf32>
    %97 = vector.broadcast %94 : vector<1x256xf32> to vector<4x256xf32>
    %98 = arith.mulf %93, %97 : vector<4x256xf32>
    %99 = vector.broadcast %96 : vector<4x1xf32> to vector<4x256xf32>
    %100 = arith.mulf %99, %98 : vector<4x256xf32>
    %101 = arith.addf %91, %100 : vector<4x256xf32>
    %c0_66 = arith.constant 0 : index
    %c0_67 = arith.constant 0 : index
    %c0_68 = arith.constant 0 : index
    %102 = vector.load %arg6[%c0_66, %c0_67, %c0_68] : memref<3x4x1xf32, #tpu.memory_space<vmem>>, vector<1x4x1xf32>
    %103 = vector.shape_cast %102 : vector<1x4x1xf32> to vector<4x1xf32>
    %104 = vector.broadcast %103 : vector<4x1xf32> to vector<4x256xf32>
    %105 = arith.addf %101, %104 : vector<4x256xf32>
    %cst_69 = arith.constant 0.000000e+00 : f32
    %106 = vector.broadcast %cst_69 : f32 to vector<4x256xf32>
    %107 = arith.maximumf %105, %106 : vector<4x256xf32>
    %c0_70 = arith.constant 0 : index
    %c0_71 = arith.constant 0 : index
    %c0_72 = arith.constant 0 : index
    %108 = vector.load %arg7[%c0_70, %c0_71, %c0_72] : memref<3x8x4xf32, #tpu.memory_space<vmem>>, vector<1x8x4xf32>
    %109 = vector.shape_cast %108 : vector<1x8x4xf32> to vector<8x4xf32>
    %cst_73 = arith.constant dense<0.000000e+00> : vector<8x256xf32>
    %110 = tpu.matmul %109, %107, %cst_73 {dimension_numbers = #tpu.dot_dimension_numbers<[1], [0], [0], [1], [0, 0, 1, 1], [], []>} : vector<8x4xf32>, vector<4x256xf32>, vector<8x256xf32> -> vector<8x256xf32>
    %c0_74 = arith.constant 0 : index
    %c0_75 = arith.constant 0 : index
    %c0_76 = arith.constant 0 : index
    %111 = vector.load %arg8[%c0_74, %c0_75, %c0_76] : memref<3x8x1xf32, #tpu.memory_space<vmem>>, vector<1x8x1xf32>
    %112 = vector.shape_cast %111 : vector<1x8x1xf32> to vector<8x1xf32>
    %113 = vector.broadcast %112 : vector<8x1xf32> to vector<8x256xf32>
    %114 = arith.addf %110, %113 : vector<8x256xf32>
    %cst_77 = arith.constant 0.000000e+00 : f32
    %115 = vector.broadcast %cst_77 : f32 to vector<8x256xf32>
    %116 = arith.maximumf %114, %115 : vector<8x256xf32>
    %c0_78 = arith.constant 0 : index
    %c8_79 = arith.constant 8 : index
    %117 = vector.load %arg9[%c0_78, %c8_79] : memref<8x32xf32, #tpu.memory_space<vmem>>, vector<8x8xf32>
    %cst_80 = arith.constant dense<0.000000e+00> : vector<8x256xf32>
    %118 = tpu.matmul %117, %116, %cst_80 {dimension_numbers = #tpu.dot_dimension_numbers<[1], [0], [0], [1], [0, 0, 1, 1], [], []>} : vector<8x8xf32>, vector<8x256xf32>, vector<8x256xf32> -> vector<8x256xf32>
    %119 = arith.addf %10, %118 : vector<8x256xf32>
    %cst_81 = arith.constant 0.000000e+00 : f32
    %120 = vector.broadcast %cst_81 : f32 to vector<4x256xf32>
    %c0_82 = arith.constant 0 : index
    %c0_83 = arith.constant 0 : index
    %c102 = arith.constant 102 : index
    %121 = vector.load %arg1[%c0_82, %c0_83, %c102] : memref<1x4x868xf32, #tpu.memory_space<vmem>>, vector<1x4x256xf32>
    %122 = vector.shape_cast %121 : vector<1x4x256xf32> to vector<4x256xf32>
    %c9 = arith.constant 9 : index
    %c0_84 = arith.constant 0 : index
    %123 = vector.load %arg2[%c9, %c0_84] : memref<27x256xf32, #tpu.memory_space<vmem>>, vector<1x256xf32>
    %c1_85 = arith.constant 1 : index
    %c0_86 = arith.constant 0 : index
    %c0_87 = arith.constant 0 : index
    %124 = vector.load %arg5[%c1_85, %c0_86, %c0_87] : memref<3x4x9xf32, #tpu.memory_space<vmem>>, vector<1x4x1xf32>
    %125 = vector.shape_cast %124 : vector<1x4x1xf32> to vector<4x1xf32>
    %126 = vector.broadcast %123 : vector<1x256xf32> to vector<4x256xf32>
    %127 = arith.mulf %122, %126 : vector<4x256xf32>
    %128 = vector.broadcast %125 : vector<4x1xf32> to vector<4x256xf32>
    %129 = arith.mulf %128, %127 : vector<4x256xf32>
    %130 = arith.addf %120, %129 : vector<4x256xf32>
    %c0_88 = arith.constant 0 : index
    %c0_89 = arith.constant 0 : index
    %c114 = arith.constant 114 : index
    %131 = vector.load %arg1[%c0_88, %c0_89, %c114] : memref<1x4x868xf32, #tpu.memory_space<vmem>>, vector<1x4x256xf32>
    %132 = vector.shape_cast %131 : vector<1x4x256xf32> to vector<4x256xf32>
    %c10 = arith.constant 10 : index
    %c0_90 = arith.constant 0 : index
    %133 = vector.load %arg2[%c10, %c0_90] : memref<27x256xf32, #tpu.memory_space<vmem>>, vector<1x256xf32>
    %c1_91 = arith.constant 1 : index
    %c0_92 = arith.constant 0 : index
    %c1_93 = arith.constant 1 : index
    %134 = vector.load %arg5[%c1_91, %c0_92, %c1_93] : memref<3x4x9xf32, #tpu.memory_space<vmem>>, vector<1x4x1xf32>
    %135 = vector.shape_cast %134 : vector<1x4x1xf32> to vector<4x1xf32>
    %136 = vector.broadcast %133 : vector<1x256xf32> to vector<4x256xf32>
    %137 = arith.mulf %132, %136 : vector<4x256xf32>
    %138 = vector.broadcast %135 : vector<4x1xf32> to vector<4x256xf32>
    %139 = arith.mulf %138, %137 : vector<4x256xf32>
    %140 = arith.addf %130, %139 : vector<4x256xf32>
    %c0_94 = arith.constant 0 : index
    %c0_95 = arith.constant 0 : index
    %c126 = arith.constant 126 : index
    %141 = vector.load %arg1[%c0_94, %c0_95, %c126] : memref<1x4x868xf32, #tpu.memory_space<vmem>>, vector<1x4x256xf32>
    %142 = vector.shape_cast %141 : vector<1x4x256xf32> to vector<4x256xf32>
    %c11 = arith.constant 11 : index
    %c0_96 = arith.constant 0 : index
    %143 = vector.load %arg2[%c11, %c0_96] : memref<27x256xf32, #tpu.memory_space<vmem>>, vector<1x256xf32>
    %c1_97 = arith.constant 1 : index
    %c0_98 = arith.constant 0 : index
    %c2_99 = arith.constant 2 : index
    %144 = vector.load %arg5[%c1_97, %c0_98, %c2_99] : memref<3x4x9xf32, #tpu.memory_space<vmem>>, vector<1x4x1xf32>
    %145 = vector.shape_cast %144 : vector<1x4x1xf32> to vector<4x1xf32>
    %146 = vector.broadcast %143 : vector<1x256xf32> to vector<4x256xf32>
    %147 = arith.mulf %142, %146 : vector<4x256xf32>
    %148 = vector.broadcast %145 : vector<4x1xf32> to vector<4x256xf32>
    %149 = arith.mulf %148, %147 : vector<4x256xf32>
    %150 = arith.addf %140, %149 : vector<4x256xf32>
    %c0_100 = arith.constant 0 : index
    %c0_101 = arith.constant 0 : index
    %c294 = arith.constant 294 : index
    %151 = vector.load %arg1[%c0_100, %c0_101, %c294] : memref<1x4x868xf32, #tpu.memory_space<vmem>>, vector<1x4x256xf32>
    %152 = vector.shape_cast %151 : vector<1x4x256xf32> to vector<4x256xf32>
    %c12 = arith.constant 12 : index
    %c0_102 = arith.constant 0 : index
    %153 = vector.load %arg2[%c12, %c0_102] : memref<27x256xf32, #tpu.memory_space<vmem>>, vector<1x256xf32>
    %c1_103 = arith.constant 1 : index
    %c0_104 = arith.constant 0 : index
    %c3_105 = arith.constant 3 : index
    %154 = vector.load %arg5[%c1_103, %c0_104, %c3_105] : memref<3x4x9xf32, #tpu.memory_space<vmem>>, vector<1x4x1xf32>
    %155 = vector.shape_cast %154 : vector<1x4x1xf32> to vector<4x1xf32>
    %156 = vector.broadcast %153 : vector<1x256xf32> to vector<4x256xf32>
    %157 = arith.mulf %152, %156 : vector<4x256xf32>
    %158 = vector.broadcast %155 : vector<4x1xf32> to vector<4x256xf32>
    %159 = arith.mulf %158, %157 : vector<4x256xf32>
    %160 = arith.addf %150, %159 : vector<4x256xf32>
    %c0_106 = arith.constant 0 : index
    %c0_107 = arith.constant 0 : index
    %c306_108 = arith.constant 306 : index
    %161 = vector.load %arg1[%c0_106, %c0_107, %c306_108] : memref<1x4x868xf32, #tpu.memory_space<vmem>>, vector<1x4x256xf32>
    %162 = vector.shape_cast %161 : vector<1x4x256xf32> to vector<4x256xf32>
    %c13 = arith.constant 13 : index
    %c0_109 = arith.constant 0 : index
    %163 = vector.load %arg2[%c13, %c0_109] : memref<27x256xf32, #tpu.memory_space<vmem>>, vector<1x256xf32>
    %c1_110 = arith.constant 1 : index
    %c0_111 = arith.constant 0 : index
    %c4_112 = arith.constant 4 : index
    %164 = vector.load %arg5[%c1_110, %c0_111, %c4_112] : memref<3x4x9xf32, #tpu.memory_space<vmem>>, vector<1x4x1xf32>
    %165 = vector.shape_cast %164 : vector<1x4x1xf32> to vector<4x1xf32>
    %166 = vector.broadcast %163 : vector<1x256xf32> to vector<4x256xf32>
    %167 = arith.mulf %162, %166 : vector<4x256xf32>
    %168 = vector.broadcast %165 : vector<4x1xf32> to vector<4x256xf32>
    %169 = arith.mulf %168, %167 : vector<4x256xf32>
    %170 = arith.addf %160, %169 : vector<4x256xf32>
    %c0_113 = arith.constant 0 : index
    %c0_114 = arith.constant 0 : index
    %c318 = arith.constant 318 : index
    %171 = vector.load %arg1[%c0_113, %c0_114, %c318] : memref<1x4x868xf32, #tpu.memory_space<vmem>>, vector<1x4x256xf32>
    %172 = vector.shape_cast %171 : vector<1x4x256xf32> to vector<4x256xf32>
    %c14 = arith.constant 14 : index
    %c0_115 = arith.constant 0 : index
    %173 = vector.load %arg2[%c14, %c0_115] : memref<27x256xf32, #tpu.memory_space<vmem>>, vector<1x256xf32>
    %c1_116 = arith.constant 1 : index
    %c0_117 = arith.constant 0 : index
    %c5_118 = arith.constant 5 : index
    %174 = vector.load %arg5[%c1_116, %c0_117, %c5_118] : memref<3x4x9xf32, #tpu.memory_space<vmem>>, vector<1x4x1xf32>
    %175 = vector.shape_cast %174 : vector<1x4x1xf32> to vector<4x1xf32>
    %176 = vector.broadcast %173 : vector<1x256xf32> to vector<4x256xf32>
    %177 = arith.mulf %172, %176 : vector<4x256xf32>
    %178 = vector.broadcast %175 : vector<4x1xf32> to vector<4x256xf32>
    %179 = arith.mulf %178, %177 : vector<4x256xf32>
    %180 = arith.addf %170, %179 : vector<4x256xf32>
    %c0_119 = arith.constant 0 : index
    %c0_120 = arith.constant 0 : index
    %c486 = arith.constant 486 : index
    %181 = vector.load %arg1[%c0_119, %c0_120, %c486] : memref<1x4x868xf32, #tpu.memory_space<vmem>>, vector<1x4x256xf32>
    %182 = vector.shape_cast %181 : vector<1x4x256xf32> to vector<4x256xf32>
    %c15 = arith.constant 15 : index
    %c0_121 = arith.constant 0 : index
    %183 = vector.load %arg2[%c15, %c0_121] : memref<27x256xf32, #tpu.memory_space<vmem>>, vector<1x256xf32>
    %c1_122 = arith.constant 1 : index
    %c0_123 = arith.constant 0 : index
    %c6_124 = arith.constant 6 : index
    %184 = vector.load %arg5[%c1_122, %c0_123, %c6_124] : memref<3x4x9xf32, #tpu.memory_space<vmem>>, vector<1x4x1xf32>
    %185 = vector.shape_cast %184 : vector<1x4x1xf32> to vector<4x1xf32>
    %186 = vector.broadcast %183 : vector<1x256xf32> to vector<4x256xf32>
    %187 = arith.mulf %182, %186 : vector<4x256xf32>
    %188 = vector.broadcast %185 : vector<4x1xf32> to vector<4x256xf32>
    %189 = arith.mulf %188, %187 : vector<4x256xf32>
    %190 = arith.addf %180, %189 : vector<4x256xf32>
    %c0_125 = arith.constant 0 : index
    %c0_126 = arith.constant 0 : index
    %c498 = arith.constant 498 : index
    %191 = vector.load %arg1[%c0_125, %c0_126, %c498] : memref<1x4x868xf32, #tpu.memory_space<vmem>>, vector<1x4x256xf32>
    %192 = vector.shape_cast %191 : vector<1x4x256xf32> to vector<4x256xf32>
    %c16 = arith.constant 16 : index
    %c0_127 = arith.constant 0 : index
    %193 = vector.load %arg2[%c16, %c0_127] : memref<27x256xf32, #tpu.memory_space<vmem>>, vector<1x256xf32>
    %c1_128 = arith.constant 1 : index
    %c0_129 = arith.constant 0 : index
    %c7_130 = arith.constant 7 : index
    %194 = vector.load %arg5[%c1_128, %c0_129, %c7_130] : memref<3x4x9xf32, #tpu.memory_space<vmem>>, vector<1x4x1xf32>
    %195 = vector.shape_cast %194 : vector<1x4x1xf32> to vector<4x1xf32>
    %196 = vector.broadcast %193 : vector<1x256xf32> to vector<4x256xf32>
    %197 = arith.mulf %192, %196 : vector<4x256xf32>
    %198 = vector.broadcast %195 : vector<4x1xf32> to vector<4x256xf32>
    %199 = arith.mulf %198, %197 : vector<4x256xf32>
    %200 = arith.addf %190, %199 : vector<4x256xf32>
    %c0_131 = arith.constant 0 : index
    %c0_132 = arith.constant 0 : index
    %c510 = arith.constant 510 : index
    %201 = vector.load %arg1[%c0_131, %c0_132, %c510] : memref<1x4x868xf32, #tpu.memory_space<vmem>>, vector<1x4x256xf32>
    %202 = vector.shape_cast %201 : vector<1x4x256xf32> to vector<4x256xf32>
    %c17 = arith.constant 17 : index
    %c0_133 = arith.constant 0 : index
    %203 = vector.load %arg2[%c17, %c0_133] : memref<27x256xf32, #tpu.memory_space<vmem>>, vector<1x256xf32>
    %c1_134 = arith.constant 1 : index
    %c0_135 = arith.constant 0 : index
    %c8_136 = arith.constant 8 : index
    %204 = vector.load %arg5[%c1_134, %c0_135, %c8_136] : memref<3x4x9xf32, #tpu.memory_space<vmem>>, vector<1x4x1xf32>
    %205 = vector.shape_cast %204 : vector<1x4x1xf32> to vector<4x1xf32>
    %206 = vector.broadcast %203 : vector<1x256xf32> to vector<4x256xf32>
    %207 = arith.mulf %202, %206 : vector<4x256xf32>
    %208 = vector.broadcast %205 : vector<4x1xf32> to vector<4x256xf32>
    %209 = arith.mulf %208, %207 : vector<4x256xf32>
    %210 = arith.addf %200, %209 : vector<4x256xf32>
    %c1_137 = arith.constant 1 : index
    %c0_138 = arith.constant 0 : index
    %c0_139 = arith.constant 0 : index
    %211 = vector.load %arg6[%c1_137, %c0_138, %c0_139] : memref<3x4x1xf32, #tpu.memory_space<vmem>>, vector<1x4x1xf32>
    %212 = vector.shape_cast %211 : vector<1x4x1xf32> to vector<4x1xf32>
    %213 = vector.broadcast %212 : vector<4x1xf32> to vector<4x256xf32>
    %214 = arith.addf %210, %213 : vector<4x256xf32>
    %cst_140 = arith.constant 0.000000e+00 : f32
    %215 = vector.broadcast %cst_140 : f32 to vector<4x256xf32>
    %216 = arith.maximumf %214, %215 : vector<4x256xf32>
    %c1_141 = arith.constant 1 : index
    %c0_142 = arith.constant 0 : index
    %c0_143 = arith.constant 0 : index
    %217 = vector.load %arg7[%c1_141, %c0_142, %c0_143] : memref<3x8x4xf32, #tpu.memory_space<vmem>>, vector<1x8x4xf32>
    %218 = vector.shape_cast %217 : vector<1x8x4xf32> to vector<8x4xf32>
    %cst_144 = arith.constant dense<0.000000e+00> : vector<8x256xf32>
    %219 = tpu.matmul %218, %216, %cst_144 {dimension_numbers = #tpu.dot_dimension_numbers<[1], [0], [0], [1], [0, 0, 1, 1], [], []>} : vector<8x4xf32>, vector<4x256xf32>, vector<8x256xf32> -> vector<8x256xf32>
    %c1_145 = arith.constant 1 : index
    %c0_146 = arith.constant 0 : index
    %c0_147 = arith.constant 0 : index
    %220 = vector.load %arg8[%c1_145, %c0_146, %c0_147] : memref<3x8x1xf32, #tpu.memory_space<vmem>>, vector<1x8x1xf32>
    %221 = vector.shape_cast %220 : vector<1x8x1xf32> to vector<8x1xf32>
    %222 = vector.broadcast %221 : vector<8x1xf32> to vector<8x256xf32>
    %223 = arith.addf %219, %222 : vector<8x256xf32>
    %cst_148 = arith.constant 0.000000e+00 : f32
    %224 = vector.broadcast %cst_148 : f32 to vector<8x256xf32>
    %225 = arith.maximumf %223, %224 : vector<8x256xf32>
    %c0_149 = arith.constant 0 : index
    %c16_150 = arith.constant 16 : index
    %226 = vector.load %arg9[%c0_149, %c16_150] : memref<8x32xf32, #tpu.memory_space<vmem>>, vector<8x8xf32>
    %cst_151 = arith.constant dense<0.000000e+00> : vector<8x256xf32>
    %227 = tpu.matmul %226, %225, %cst_151 {dimension_numbers = #tpu.dot_dimension_numbers<[1], [0], [0], [1], [0, 0, 1, 1], [], []>} : vector<8x8xf32>, vector<8x256xf32>, vector<8x256xf32> -> vector<8x256xf32>
    %228 = arith.addf %119, %227 : vector<8x256xf32>
    %cst_152 = arith.constant 0.000000e+00 : f32
    %229 = vector.broadcast %cst_152 : f32 to vector<4x256xf32>
    %c0_153 = arith.constant 0 : index
    %c0_154 = arith.constant 0 : index
    %c0_155 = arith.constant 0 : index
    %230 = vector.load %arg1[%c0_153, %c0_154, %c0_155] : memref<1x4x868xf32, #tpu.memory_space<vmem>>, vector<1x4x256xf32>
    %231 = vector.shape_cast %230 : vector<1x4x256xf32> to vector<4x256xf32>
    %c18 = arith.constant 18 : index
    %c0_156 = arith.constant 0 : index
    %232 = vector.load %arg2[%c18, %c0_156] : memref<27x256xf32, #tpu.memory_space<vmem>>, vector<1x256xf32>
    %c2_157 = arith.constant 2 : index
    %c0_158 = arith.constant 0 : index
    %c0_159 = arith.constant 0 : index
    %233 = vector.load %arg5[%c2_157, %c0_158, %c0_159] : memref<3x4x9xf32, #tpu.memory_space<vmem>>, vector<1x4x1xf32>
    %234 = vector.shape_cast %233 : vector<1x4x1xf32> to vector<4x1xf32>
    %235 = vector.broadcast %232 : vector<1x256xf32> to vector<4x256xf32>
    %236 = arith.mulf %231, %235 : vector<4x256xf32>
    %237 = vector.broadcast %234 : vector<4x1xf32> to vector<4x256xf32>
    %238 = arith.mulf %237, %236 : vector<4x256xf32>
    %239 = arith.addf %229, %238 : vector<4x256xf32>
    %c0_160 = arith.constant 0 : index
    %c0_161 = arith.constant 0 : index
    %c18_162 = arith.constant 18 : index
    %240 = vector.load %arg1[%c0_160, %c0_161, %c18_162] : memref<1x4x868xf32, #tpu.memory_space<vmem>>, vector<1x4x256xf32>
    %241 = vector.shape_cast %240 : vector<1x4x256xf32> to vector<4x256xf32>
    %c19 = arith.constant 19 : index
    %c0_163 = arith.constant 0 : index
    %242 = vector.load %arg2[%c19, %c0_163] : memref<27x256xf32, #tpu.memory_space<vmem>>, vector<1x256xf32>
    %c2_164 = arith.constant 2 : index
    %c0_165 = arith.constant 0 : index
    %c1_166 = arith.constant 1 : index
    %243 = vector.load %arg5[%c2_164, %c0_165, %c1_166] : memref<3x4x9xf32, #tpu.memory_space<vmem>>, vector<1x4x1xf32>
    %244 = vector.shape_cast %243 : vector<1x4x1xf32> to vector<4x1xf32>
    %245 = vector.broadcast %242 : vector<1x256xf32> to vector<4x256xf32>
    %246 = arith.mulf %241, %245 : vector<4x256xf32>
    %247 = vector.broadcast %244 : vector<4x1xf32> to vector<4x256xf32>
    %248 = arith.mulf %247, %246 : vector<4x256xf32>
    %249 = arith.addf %239, %248 : vector<4x256xf32>
    %c0_167 = arith.constant 0 : index
    %c0_168 = arith.constant 0 : index
    %c36 = arith.constant 36 : index
    %250 = vector.load %arg1[%c0_167, %c0_168, %c36] : memref<1x4x868xf32, #tpu.memory_space<vmem>>, vector<1x4x256xf32>
    %251 = vector.shape_cast %250 : vector<1x4x256xf32> to vector<4x256xf32>
    %c20 = arith.constant 20 : index
    %c0_169 = arith.constant 0 : index
    %252 = vector.load %arg2[%c20, %c0_169] : memref<27x256xf32, #tpu.memory_space<vmem>>, vector<1x256xf32>
    %c2_170 = arith.constant 2 : index
    %c0_171 = arith.constant 0 : index
    %c2_172 = arith.constant 2 : index
    %253 = vector.load %arg5[%c2_170, %c0_171, %c2_172] : memref<3x4x9xf32, #tpu.memory_space<vmem>>, vector<1x4x1xf32>
    %254 = vector.shape_cast %253 : vector<1x4x1xf32> to vector<4x1xf32>
    %255 = vector.broadcast %252 : vector<1x256xf32> to vector<4x256xf32>
    %256 = arith.mulf %251, %255 : vector<4x256xf32>
    %257 = vector.broadcast %254 : vector<4x1xf32> to vector<4x256xf32>
    %258 = arith.mulf %257, %256 : vector<4x256xf32>
    %259 = arith.addf %249, %258 : vector<4x256xf32>
    %c0_173 = arith.constant 0 : index
    %c0_174 = arith.constant 0 : index
    %c288 = arith.constant 288 : index
    %260 = vector.load %arg1[%c0_173, %c0_174, %c288] : memref<1x4x868xf32, #tpu.memory_space<vmem>>, vector<1x4x256xf32>
    %261 = vector.shape_cast %260 : vector<1x4x256xf32> to vector<4x256xf32>
    %c21 = arith.constant 21 : index
    %c0_175 = arith.constant 0 : index
    %262 = vector.load %arg2[%c21, %c0_175] : memref<27x256xf32, #tpu.memory_space<vmem>>, vector<1x256xf32>
    %c2_176 = arith.constant 2 : index
    %c0_177 = arith.constant 0 : index
    %c3_178 = arith.constant 3 : index
    %263 = vector.load %arg5[%c2_176, %c0_177, %c3_178] : memref<3x4x9xf32, #tpu.memory_space<vmem>>, vector<1x4x1xf32>
    %264 = vector.shape_cast %263 : vector<1x4x1xf32> to vector<4x1xf32>
    %265 = vector.broadcast %262 : vector<1x256xf32> to vector<4x256xf32>
    %266 = arith.mulf %261, %265 : vector<4x256xf32>
    %267 = vector.broadcast %264 : vector<4x1xf32> to vector<4x256xf32>
    %268 = arith.mulf %267, %266 : vector<4x256xf32>
    %269 = arith.addf %259, %268 : vector<4x256xf32>
    %c0_179 = arith.constant 0 : index
    %c0_180 = arith.constant 0 : index
    %c306_181 = arith.constant 306 : index
    %270 = vector.load %arg1[%c0_179, %c0_180, %c306_181] : memref<1x4x868xf32, #tpu.memory_space<vmem>>, vector<1x4x256xf32>
    %271 = vector.shape_cast %270 : vector<1x4x256xf32> to vector<4x256xf32>
    %c22 = arith.constant 22 : index
    %c0_182 = arith.constant 0 : index
    %272 = vector.load %arg2[%c22, %c0_182] : memref<27x256xf32, #tpu.memory_space<vmem>>, vector<1x256xf32>
    %c2_183 = arith.constant 2 : index
    %c0_184 = arith.constant 0 : index
    %c4_185 = arith.constant 4 : index
    %273 = vector.load %arg5[%c2_183, %c0_184, %c4_185] : memref<3x4x9xf32, #tpu.memory_space<vmem>>, vector<1x4x1xf32>
    %274 = vector.shape_cast %273 : vector<1x4x1xf32> to vector<4x1xf32>
    %275 = vector.broadcast %272 : vector<1x256xf32> to vector<4x256xf32>
    %276 = arith.mulf %271, %275 : vector<4x256xf32>
    %277 = vector.broadcast %274 : vector<4x1xf32> to vector<4x256xf32>
    %278 = arith.mulf %277, %276 : vector<4x256xf32>
    %279 = arith.addf %269, %278 : vector<4x256xf32>
    %c0_186 = arith.constant 0 : index
    %c0_187 = arith.constant 0 : index
    %c324 = arith.constant 324 : index
    %280 = vector.load %arg1[%c0_186, %c0_187, %c324] : memref<1x4x868xf32, #tpu.memory_space<vmem>>, vector<1x4x256xf32>
    %281 = vector.shape_cast %280 : vector<1x4x256xf32> to vector<4x256xf32>
    %c23 = arith.constant 23 : index
    %c0_188 = arith.constant 0 : index
    %282 = vector.load %arg2[%c23, %c0_188] : memref<27x256xf32, #tpu.memory_space<vmem>>, vector<1x256xf32>
    %c2_189 = arith.constant 2 : index
    %c0_190 = arith.constant 0 : index
    %c5_191 = arith.constant 5 : index
    %283 = vector.load %arg5[%c2_189, %c0_190, %c5_191] : memref<3x4x9xf32, #tpu.memory_space<vmem>>, vector<1x4x1xf32>
    %284 = vector.shape_cast %283 : vector<1x4x1xf32> to vector<4x1xf32>
    %285 = vector.broadcast %282 : vector<1x256xf32> to vector<4x256xf32>
    %286 = arith.mulf %281, %285 : vector<4x256xf32>
    %287 = vector.broadcast %284 : vector<4x1xf32> to vector<4x256xf32>
    %288 = arith.mulf %287, %286 : vector<4x256xf32>
    %289 = arith.addf %279, %288 : vector<4x256xf32>
    %c0_192 = arith.constant 0 : index
    %c0_193 = arith.constant 0 : index
    %c576 = arith.constant 576 : index
    %290 = vector.load %arg1[%c0_192, %c0_193, %c576] : memref<1x4x868xf32, #tpu.memory_space<vmem>>, vector<1x4x256xf32>
    %291 = vector.shape_cast %290 : vector<1x4x256xf32> to vector<4x256xf32>
    %c24 = arith.constant 24 : index
    %c0_194 = arith.constant 0 : index
    %292 = vector.load %arg2[%c24, %c0_194] : memref<27x256xf32, #tpu.memory_space<vmem>>, vector<1x256xf32>
    %c2_195 = arith.constant 2 : index
    %c0_196 = arith.constant 0 : index
    %c6_197 = arith.constant 6 : index
    %293 = vector.load %arg5[%c2_195, %c0_196, %c6_197] : memref<3x4x9xf32, #tpu.memory_space<vmem>>, vector<1x4x1xf32>
    %294 = vector.shape_cast %293 : vector<1x4x1xf32> to vector<4x1xf32>
    %295 = vector.broadcast %292 : vector<1x256xf32> to vector<4x256xf32>
    %296 = arith.mulf %291, %295 : vector<4x256xf32>
    %297 = vector.broadcast %294 : vector<4x1xf32> to vector<4x256xf32>
    %298 = arith.mulf %297, %296 : vector<4x256xf32>
    %299 = arith.addf %289, %298 : vector<4x256xf32>
    %c0_198 = arith.constant 0 : index
    %c0_199 = arith.constant 0 : index
    %c594 = arith.constant 594 : index
    %300 = vector.load %arg1[%c0_198, %c0_199, %c594] : memref<1x4x868xf32, #tpu.memory_space<vmem>>, vector<1x4x256xf32>
    %301 = vector.shape_cast %300 : vector<1x4x256xf32> to vector<4x256xf32>
    %c25 = arith.constant 25 : index
    %c0_200 = arith.constant 0 : index
    %302 = vector.load %arg2[%c25, %c0_200] : memref<27x256xf32, #tpu.memory_space<vmem>>, vector<1x256xf32>
    %c2_201 = arith.constant 2 : index
    %c0_202 = arith.constant 0 : index
    %c7_203 = arith.constant 7 : index
    %303 = vector.load %arg5[%c2_201, %c0_202, %c7_203] : memref<3x4x9xf32, #tpu.memory_space<vmem>>, vector<1x4x1xf32>
    %304 = vector.shape_cast %303 : vector<1x4x1xf32> to vector<4x1xf32>
    %305 = vector.broadcast %302 : vector<1x256xf32> to vector<4x256xf32>
    %306 = arith.mulf %301, %305 : vector<4x256xf32>
    %307 = vector.broadcast %304 : vector<4x1xf32> to vector<4x256xf32>
    %308 = arith.mulf %307, %306 : vector<4x256xf32>
    %309 = arith.addf %299, %308 : vector<4x256xf32>
    %c0_204 = arith.constant 0 : index
    %c0_205 = arith.constant 0 : index
    %c612 = arith.constant 612 : index
    %310 = vector.load %arg1[%c0_204, %c0_205, %c612] : memref<1x4x868xf32, #tpu.memory_space<vmem>>, vector<1x4x256xf32>
    %311 = vector.shape_cast %310 : vector<1x4x256xf32> to vector<4x256xf32>
    %c26 = arith.constant 26 : index
    %c0_206 = arith.constant 0 : index
    %312 = vector.load %arg2[%c26, %c0_206] : memref<27x256xf32, #tpu.memory_space<vmem>>, vector<1x256xf32>
    %c2_207 = arith.constant 2 : index
    %c0_208 = arith.constant 0 : index
    %c8_209 = arith.constant 8 : index
    %313 = vector.load %arg5[%c2_207, %c0_208, %c8_209] : memref<3x4x9xf32, #tpu.memory_space<vmem>>, vector<1x4x1xf32>
    %314 = vector.shape_cast %313 : vector<1x4x1xf32> to vector<4x1xf32>
    %315 = vector.broadcast %312 : vector<1x256xf32> to vector<4x256xf32>
    %316 = arith.mulf %311, %315 : vector<4x256xf32>
    %317 = vector.broadcast %314 : vector<4x1xf32> to vector<4x256xf32>
    %318 = arith.mulf %317, %316 : vector<4x256xf32>
    %319 = arith.addf %309, %318 : vector<4x256xf32>
    %c2_210 = arith.constant 2 : index
    %c0_211 = arith.constant 0 : index
    %c0_212 = arith.constant 0 : index
    %320 = vector.load %arg6[%c2_210, %c0_211, %c0_212] : memref<3x4x1xf32, #tpu.memory_space<vmem>>, vector<1x4x1xf32>
    %321 = vector.shape_cast %320 : vector<1x4x1xf32> to vector<4x1xf32>
    %322 = vector.broadcast %321 : vector<4x1xf32> to vector<4x256xf32>
    %323 = arith.addf %319, %322 : vector<4x256xf32>
    %cst_213 = arith.constant 0.000000e+00 : f32
    %324 = vector.broadcast %cst_213 : f32 to vector<4x256xf32>
    %325 = arith.maximumf %323, %324 : vector<4x256xf32>
    %c2_214 = arith.constant 2 : index
    %c0_215 = arith.constant 0 : index
    %c0_216 = arith.constant 0 : index
    %326 = vector.load %arg7[%c2_214, %c0_215, %c0_216] : memref<3x8x4xf32, #tpu.memory_space<vmem>>, vector<1x8x4xf32>
    %327 = vector.shape_cast %326 : vector<1x8x4xf32> to vector<8x4xf32>
    %cst_217 = arith.constant dense<0.000000e+00> : vector<8x256xf32>
    %328 = tpu.matmul %327, %325, %cst_217 {dimension_numbers = #tpu.dot_dimension_numbers<[1], [0], [0], [1], [0, 0, 1, 1], [], []>} : vector<8x4xf32>, vector<4x256xf32>, vector<8x256xf32> -> vector<8x256xf32>
    %c2_218 = arith.constant 2 : index
    %c0_219 = arith.constant 0 : index
    %c0_220 = arith.constant 0 : index
    %329 = vector.load %arg8[%c2_218, %c0_219, %c0_220] : memref<3x8x1xf32, #tpu.memory_space<vmem>>, vector<1x8x1xf32>
    %330 = vector.shape_cast %329 : vector<1x8x1xf32> to vector<8x1xf32>
    %331 = vector.broadcast %330 : vector<8x1xf32> to vector<8x256xf32>
    %332 = arith.addf %328, %331 : vector<8x256xf32>
    %cst_221 = arith.constant 0.000000e+00 : f32
    %333 = vector.broadcast %cst_221 : f32 to vector<8x256xf32>
    %334 = arith.maximumf %332, %333 : vector<8x256xf32>
    %c0_222 = arith.constant 0 : index
    %c24_223 = arith.constant 24 : index
    %335 = vector.load %arg9[%c0_222, %c24_223] : memref<8x32xf32, #tpu.memory_space<vmem>>, vector<8x8xf32>
    %cst_224 = arith.constant dense<0.000000e+00> : vector<8x256xf32>
    %336 = tpu.matmul %335, %334, %cst_224 {dimension_numbers = #tpu.dot_dimension_numbers<[1], [0], [0], [1], [0, 0, 1, 1], [], []>} : vector<8x8xf32>, vector<8x256xf32>, vector<8x256xf32> -> vector<8x256xf32>
    %337 = arith.addf %228, %336 : vector<8x256xf32>
    %c0_225 = arith.constant 0 : index
    %c0_226 = arith.constant 0 : index
    %338 = vector.load %arg10[%c0_225, %c0_226] : memref<8x1xf32, #tpu.memory_space<vmem>>, vector<8x1xf32>
    %339 = vector.broadcast %338 : vector<8x1xf32> to vector<8x256xf32>
    %340 = arith.addf %337, %339 : vector<8x256xf32>
    %cst_227 = arith.constant 0.000000e+00 : f32
    %341 = vector.broadcast %cst_227 : f32 to vector<8x256xf32>
    %342 = arith.maximumf %340, %341 : vector<8x256xf32>
    %c0_228 = arith.constant 0 : index
    %c0_229 = arith.constant 0 : index
    %c0_230 = arith.constant 0 : index
    %343 = vector.load %arg11[%c0_228, %c0_229, %c0_230] : memref<1x8x256xf32, #tpu.memory_space<vmem>>, vector<1x8x256xf32>
    %344 = vector.shape_cast %343 : vector<1x8x256xf32> to vector<8x256xf32>
    %345 = vector.shape_cast %342 : vector<8x256xf32> to vector<1x8x256xf32>
    tpu.vector_store %arg11[%c0_228, %c0_229, %c0_230], %345 {strides = array<i32>} : memref<1x8x256xf32, #tpu.memory_space<vmem>>, vector<1x8x256xf32>,
    return
  }
  func.func @transform_0(%arg0: i32) -> (i32, i32, i32) {
    %c0_i32 = arith.constant 0 : i32
    %c0_i32_0 = arith.constant 0 : i32
    %c0_i32_1 = arith.constant 0 : i32
    return %arg0, %c0_i32, %c0_i32_0 : i32, i32, i32
  }
  func.func @transform_1(%arg0: i32) -> (i32, i32) {
    %c0_i32 = arith.constant 0 : i32
    %c0_i32_0 = arith.constant 0 : i32
    %c0_i32_1 = arith.constant 0 : i32
    return %c0_i32, %c0_i32_0 : i32, i32
  }
  func.func @transform_2(%arg0: i32) -> (i32, i32) {
    %c0_i32 = arith.constant 0 : i32
    %c0_i32_0 = arith.constant 0 : i32
    %c0_i32_1 = arith.constant 0 : i32
    return %c0_i32, %c0_i32_0 : i32, i32
  }
  func.func @transform_3(%arg0: i32) -> (i32, i32) {
    %c0_i32 = arith.constant 0 : i32
    %c0_i32_0 = arith.constant 0 : i32
    %c0_i32_1 = arith.constant 0 : i32
    return %c0_i32, %c0_i32_0 : i32, i32
  }
  func.func @transform_4(%arg0: i32) -> (i32, i32, i32) {
    %c0_i32 = arith.constant 0 : i32
    %c0_i32_0 = arith.constant 0 : i32
    %c0_i32_1 = arith.constant 0 : i32
    %c0_i32_2 = arith.constant 0 : i32
    return %c0_i32, %c0_i32_0, %c0_i32_1 : i32, i32, i32
  }
  func.func @transform_5(%arg0: i32) -> (i32, i32, i32) {
    %c0_i32 = arith.constant 0 : i32
    %c0_i32_0 = arith.constant 0 : i32
    %c0_i32_1 = arith.constant 0 : i32
    %c0_i32_2 = arith.constant 0 : i32
    return %c0_i32, %c0_i32_0, %c0_i32_1 : i32, i32, i32
  }
  func.func @transform_6(%arg0: i32) -> (i32, i32, i32) {
    %c0_i32 = arith.constant 0 : i32
    %c0_i32_0 = arith.constant 0 : i32
    %c0_i32_1 = arith.constant 0 : i32
    %c0_i32_2 = arith.constant 0 : i32
    return %c0_i32, %c0_i32_0, %c0_i32_1 : i32, i32, i32
  }
  func.func @transform_7(%arg0: i32) -> (i32, i32, i32) {
    %c0_i32 = arith.constant 0 : i32
    %c0_i32_0 = arith.constant 0 : i32
    %c0_i32_1 = arith.constant 0 : i32
    %c0_i32_2 = arith.constant 0 : i32
    return %c0_i32, %c0_i32_0, %c0_i32_1 : i32, i32, i32
  }
  func.func @transform_8(%arg0: i32) -> (i32, i32) {
    %c0_i32 = arith.constant 0 : i32
    %c0_i32_0 = arith.constant 0 : i32
    %c0_i32_1 = arith.constant 0 : i32
    return %c0_i32, %c0_i32_0 : i32, i32
  }
  func.func @transform_9(%arg0: i32) -> (i32, i32) {
    %c0_i32 = arith.constant 0 : i32
    %c0_i32_0 = arith.constant 0 : i32
    %c0_i32_1 = arith.constant 0 : i32
    return %c0_i32, %c0_i32_0 : i32, i32
  }
  func.func @transform_10(%arg0: i32) -> (i32, i32, i32) {
    %c0_i32 = arith.constant 0 : i32
    %c0_i32_0 = arith.constant 0 : i32
    %c0_i32_1 = arith.constant 0 : i32
    return %arg0, %c0_i32, %c0_i32_0 : i32, i32, i32
  }
}

</mosaic_0001>

<llo_original>
// kernel: dwaspp_lite_forward.1
$region0: #{dwaspp_lite_forward.1}
  #allocation0 [shape = 'u32[]', space=smem, size = 0x4, offset = 0x4, fixed_abs, tag = 'smem constant byte address 0x4 - core index']
  #allocation1 [shape = 'u32[72,128]{1,0:T(1,128)}', space=vmem, size = 0x9000, scoped, tag = 'internal scratch']
  %s0 = inlined_call_operand.vmem [shape: f32[2,4,868], index: 0, kind: input, shape index: {}]
  %s1 = inlined_call_operand.vmem [shape: f32[27,256], index: 1, kind: input, shape index: {}]
  %s2 = inlined_call_operand.vmem [shape: f32[8,4], index: 2, kind: input, shape index: {}]
  %s3 = inlined_call_operand.vmem [shape: f32[8,1], index: 3, kind: input, shape index: {}]
  %s4 = inlined_call_operand.vmem [shape: f32[3,4,9], index: 4, kind: input, shape index: {}]
  %s5 = inlined_call_operand.vmem [shape: f32[3,4,1], index: 5, kind: input, shape index: {}]
  %s6 = inlined_call_operand.vmem [shape: f32[3,8,4], index: 6, kind: input, shape index: {}]
  %s7 = inlined_call_operand.vmem [shape: f32[3,8,1], index: 7, kind: input, shape index: {}]
  %s8 = inlined_call_operand.vmem [shape: f32[8,32], index: 8, kind: input, shape index: {}]
  %s9 = inlined_call_operand.vmem [shape: f32[8,1], index: 9, kind: input, shape index: {}]
  %s10 = inlined_call_operand.vmem [shape: f32[2,8,256], index: 10, kind: output, shape index: {}]
  %s11 = sld [smem:[#allocation0]]
  $region73: #{dwaspp_lite_forward.1} parent=0
    _
  %s13 = ssub.s32 1, %s11
  %s14 = scalar_select 0, %s13, %s11
  loop: start=0, step=1, limit=4
  $region2: #{dwaspp_lite_forward.1} parent=0 // loop_pre_header
    _
  $region3: #{dwaspp_lite_forward.1} parent=0 // loop_header
    %s16 = sphi 0, %s20
    %p17 = scmp.ge.s32.totalorder %s16, 4
    %s26 = sphi 0, %s28
    %s29 = sphi 0, %s26
    %s30 = sphi 0, %s29
    %s46 = sphi 0, %s30
    %s50 = sphi 0, %s50
    %s52 = sphi 0, %s50
    %s53 = sphi 0, %s52
    %s67 = sphi 0, %s53
    %s71 = sphi 0, %s71
    %s73 = sphi 0, %s71
    %s74 = sphi 0, %s73
    %s88 = sphi 0, %s74
    %s92 = sphi 0, %s92
    %s94 = sphi 0, %s92
    %s95 = sphi 0, %s94
    %s109 = sphi 0, %s95
    %s113 = sphi 0, %s113
    %s115 = sphi 0, %s113
    %s116 = sphi 0, %s115
    %s130 = sphi 0, %s116
    %s134 = sphi 0, %s134
    %s136 = sphi 0, %s134
    %s137 = sphi 0, %s136
    %s151 = sphi 0, %s137
    %s155 = sphi 0, %s155
    %s157 = sphi 0, %s155
    %s158 = sphi 0, %s157
    %s172 = sphi 0, %s158
    %s176 = sphi 0, %s176
    %s178 = sphi 0, %s176
    %s179 = sphi 0, %s178
    %s193 = sphi 0, %s179
    %s197 = sphi 0, %s197
    %s199 = sphi 0, %s197
    %s200 = sphi 0, %s199
    %s214 = sphi 0, %s200
    %s218 = sphi 0, %s218
    %s220 = sphi 0, %s218
    %s221 = sphi 0, %s220
    %s235 = sphi 0, %s221
    %s241 = sphi 0, %s243
    %s244 = sphi 0, %s241
    %s245 = sphi 0, %s244
    %s261 = sphi 0, %s245
  $region4: #{dwaspp_lite_forward.1} parent=0 // loop_header_branch
    %19 = sbr.rel (%p17) target = $region8
  $region5: #{dwaspp_lite_forward.1} parent=0 // loop_body
    %s21 = ssub.s32 %s16, 1
    %s22 = ssub.s32 %s16, 2
    %s23 = sadd.s32 %s16, 1
    %s24 = ssub.s32 %s16, %s23
    %p25 = scmp.eq.s32.totalorder %s24, 0
    %s27 = sadd.s32 %s26, 1
    %s28 = scalar_select %p25, %s26, %s27
    %p31 = pneg %p25
    %p32 = scmp.eq.s32.totalorder %s16, 1
    %p33 = por %p31, %p32
    %p34 = scmp.ne.s32.totalorder %s26, %s29
    %p35 = scmp.eq.s32.totalorder %s16, 0
    %p36 = por %p34, %p35
    %p37 = scmp.ne.s32.totalorder %s26, %s29
    %p38 = scmp.eq.s32.totalorder %s21, 1
    %p39 = por %p37, %p38
    %p40 = scmp.ne.s32.totalorder %s29, %s30
    %p41 = scmp.eq.s32.totalorder %s21, 0
    %p42 = por %p40, %p41
    %p43 = scmp.ne.s32.totalorder %s29, %s30
    %p44 = scmp.eq.s32.totalorder %s22, 1
    %p45 = por %p43, %p44
    %p47 = scmp.ne.s32.totalorder %s30, %s46
    %p48 = scmp.eq.s32.totalorder %s22, 0
    %p49 = por %p47, %p48
    %s51 = sadd.s32 %s50, 1
    %p54 = scmp.eq.s32.totalorder %s16, 1
    %p55 = scmp.ne.s32.totalorder %s50, %s52
    %p56 = scmp.eq.s32.totalorder %s16, 0
    %p57 = por %p55, %p56
    %p58 = scmp.ne.s32.totalorder %s50, %s52
    %p59 = scmp.eq.s32.totalorder %s21, 1
    %p60 = por %p58, %p59
    %p61 = scmp.ne.s32.totalorder %s52, %s53
    %p62 = scmp.eq.s32.totalorder %s21, 0
    %p63 = por %p61, %p62
    %p64 = scmp.ne.s32.totalorder %s52, %s53
    %p65 = scmp.eq.s32.totalorder %s22, 1
    %p66 = por %p64, %p65
    %p68 = scmp.ne.s32.totalorder %s53, %s67
    %p69 = scmp.eq.s32.totalorder %s22, 0
    %p70 = por %p68, %p69
    %s72 = sadd.s32 %s71, 1
    %p75 = scmp.eq.s32.totalorder %s16, 1
    %p76 = scmp.ne.s32.totalorder %s71, %s73
    %p77 = scmp.eq.s32.totalorder %s16, 0
    %p78 = por %p76, %p77
    %p79 = scmp.ne.s32.totalorder %s71, %s73
    %p80 = scmp.eq.s32.totalorder %s21, 1
    %p81 = por %p79, %p80
    %p82 = scmp.ne.s32.totalorder %s73, %s74
    %p83 = scmp.eq.s32.totalorder %s21, 0
    %p84 = por %p82, %p83
    %p85 = scmp.ne.s32.totalorder %s73, %s74
    %p86 = scmp.eq.s32.totalorder %s22, 1
    %p87 = por %p85, %p86
    %p89 = scmp.ne.s32.totalorder %s74, %s88
    %p90 = scmp.eq.s32.totalorder %s22, 0
    %p91 = por %p89, %p90
    %s93 = sadd.s32 %s92, 1
    %p96 = scmp.eq.s32.totalorder %s16, 1
    %p97 = scmp.ne.s32.totalorder %s92, %s94
    %p98 = scmp.eq.s32.totalorder %s16, 0
    %p99 = por %p97, %p98
    %p100 = scmp.ne.s32.totalorder %s92, %s94
    %p101 = scmp.eq.s32.totalorder %s21, 1
    %p102 = por %p100, %p101
    %p103 = scmp.ne.s32.totalorder %s94, %s95
    %p104 = scmp.eq.s32.totalorder %s21, 0
    %p105 = por %p103, %p104
    %p106 = scmp.ne.s32.totalorder %s94, %s95
    %p107 = scmp.eq.s32.totalorder %s22, 1
    %p108 = por %p106, %p107
    %p110 = scmp.ne.s32.totalorder %s95, %s109
    %p111 = scmp.eq.s32.totalorder %s22, 0
    %p112 = por %p110, %p111
    %s114 = sadd.s32 %s113, 1
    %p117 = scmp.eq.s32.totalorder %s16, 1
    %p118 = scmp.ne.s32.totalorder %s113, %s115
    %p119 = scmp.eq.s32.totalorder %s16, 0
    %p120 = por %p118, %p119
    %p121 = scmp.ne.s32.totalorder %s113, %s115
    %p122 = scmp.eq.s32.totalorder %s21, 1
    %p123 = por %p121, %p122
    %p124 = scmp.ne.s32.totalorder %s115, %s116
    %p125 = scmp.eq.s32.totalorder %s21, 0
    %p126 = por %p124, %p125
    %p127 = scmp.ne.s32.totalorder %s115, %s116
    %p128 = scmp.eq.s32.totalorder %s22, 1
    %p129 = por %p127, %p128
    %p131 = scmp.ne.s32.totalorder %s116, %s130
    %p132 = scmp.eq.s32.totalorder %s22, 0
    %p133 = por %p131, %p132
    %s135 = sadd.s32 %s134, 1
    %p138 = scmp.eq.s32.totalorder %s16, 1
    %p139 = scmp.ne.s32.totalorder %s134, %s136
    %p140 = scmp.eq.s32.totalorder %s16, 0
    %p141 = por %p139, %p140
    %p142 = scmp.ne.s32.totalorder %s134, %s136
    %p143 = scmp.eq.s32.totalorder %s21, 1
    %p144 = por %p142, %p143
    %p145 = scmp.ne.s32.totalorder %s136, %s137
    %p146 = scmp.eq.s32.totalorder %s21, 0
    %p147 = por %p145, %p146
    %p148 = scmp.ne.s32.totalorder %s136, %s137
    %p149 = scmp.eq.s32.totalorder %s22, 1
    %p150 = por %p148, %p149
    %p152 = scmp.ne.s32.totalorder %s137, %s151
    %p153 = scmp.eq.s32.totalorder %s22, 0
    %p154 = por %p152, %p153
    %s156 = sadd.s32 %s155, 1
    %p159 = scmp.eq.s32.totalorder %s16, 1
    %p160 = scmp.ne.s32.totalorder %s155, %s157
    %p161 = scmp.eq.s32.totalorder %s16, 0
    %p162 = por %p160, %p161
    %p163 = scmp.ne.s32.totalorder %s155, %s157
    %p164 = scmp.eq.s32.totalorder %s21, 1
    %p165 = por %p163, %p164
    %p166 = scmp.ne.s32.totalorder %s157, %s158
    %p167 = scmp.eq.s32.totalorder %s21, 0
    %p168 = por %p166, %p167
    %p169 = scmp.ne.s32.totalorder %s157, %s158
    %p170 = scmp.eq.s32.totalorder %s22, 1
    %p171 = por %p169, %p170
    %p173 = scmp.ne.s32.totalorder %s158, %s172
    %p174 = scmp.eq.s32.totalorder %s22, 0
    %p175 = por %p173, %p174
    %s177 = sadd.s32 %s176, 1
    %p180 = scmp.eq.s32.totalorder %s16, 1
    %p181 = scmp.ne.s32.totalorder %s176, %s178
    %p182 = scmp.eq.s32.totalorder %s16, 0
    %p183 = por %p181, %p182
    %p184 = scmp.ne.s32.totalorder %s176, %s178
    %p185 = scmp.eq.s32.totalorder %s21, 1
    %p186 = por %p184, %p185
    %p187 = scmp.ne.s32.totalorder %s178, %s179
    %p188 = scmp.eq.s32.totalorder %s21, 0
    %p189 = por %p187, %p188
    %p190 = scmp.ne.s32.totalorder %s178, %s179
    %p191 = scmp.eq.s32.totalorder %s22, 1
    %p192 = por %p190, %p191
    %p194 = scmp.ne.s32.totalorder %s179, %s193
    %p195 = scmp.eq.s32.totalorder %s22, 0
    %p196 = por %p194, %p195
    %s198 = sadd.s32 %s197, 1
    %p201 = scmp.eq.s32.totalorder %s16, 1
    %p202 = scmp.ne.s32.totalorder %s197, %s199
    %p203 = scmp.eq.s32.totalorder %s16, 0
    %p204 = por %p202, %p203
    %p205 = scmp.ne.s32.totalorder %s197, %s199
    %p206 = scmp.eq.s32.totalorder %s21, 1
    %p207 = por %p205, %p206
    %p208 = scmp.ne.s32.totalorder %s199, %s200
    %p209 = scmp.eq.s32.totalorder %s21, 0
    %p210 = por %p208, %p209
    %p211 = scmp.ne.s32.totalorder %s199, %s200
    %p212 = scmp.eq.s32.totalorder %s22, 1
    %p213 = por %p211, %p212
    %p215 = scmp.ne.s32.totalorder %s200, %s214
    %p216 = scmp.eq.s32.totalorder %s22, 0
    %p217 = por %p215, %p216
    %s219 = sadd.s32 %s218, 1
    %p222 = scmp.eq.s32.totalorder %s16, 1
    %p223 = scmp.ne.s32.totalorder %s218, %s220
    %p224 = scmp.eq.s32.totalorder %s16, 0
    %p225 = por %p223, %p224
    %p226 = scmp.ne.s32.totalorder %s218, %s220
    %p227 = scmp.eq.s32.totalorder %s21, 1
    %p228 = por %p226, %p227
    %p229 = scmp.ne.s32.totalorder %s220, %s221
    %p230 = scmp.eq.s32.totalorder %s21, 0
    %p231 = por %p229, %p230
    %p232 = scmp.ne.s32.totalorder %s220, %s221
    %p233 = scmp.eq.s32.totalorder %s22, 1
    %p234 = por %p232, %p233
    %p236 = scmp.ne.s32.totalorder %s221, %s235
    %p237 = scmp.eq.s32.totalorder %s22, 0
    %p238 = por %p236, %p237
    %s239 = ssub.s32 %s16, %s23
    %p240 = scmp.eq.s32.totalorder %s239, 0
    %s242 = sadd.s32 %s241, 1
    %s243 = scalar_select %p240, %s241, %s242
    %p246 = pneg %p240
    %p247 = scmp.eq.s32.totalorder %s16, 1
    %p248 = por %p246, %p247
    %p249 = scmp.ne.s32.totalorder %s241, %s244
    %p250 = scmp.eq.s32.totalorder %s16, 0
    %p251 = por %p249, %p250
    %p252 = scmp.ne.s32.totalorder %s241, %s244
    %p253 = scmp.eq.s32.totalorder %s21, 1
    %p254 = por %p252, %p253
    %p255 = scmp.ne.s32.totalorder %s244, %s245
    %p256 = scmp.eq.s32.totalorder %s21, 0
    %p257 = por %p255, %p256
    %p258 = scmp.ne.s32.totalorder %s244, %s245
    %p259 = scmp.eq.s32.totalorder %s22, 1
    %p260 = por %p258, %p259
    %p262 = scmp.ne.s32.totalorder %s245, %s261
    %p263 = scmp.eq.s32.totalorder %s22, 0
    %p264 = por %p262, %p263
    %p265 = scmp.le.s32.totalorder 1, %s16
    %p266 = scmp.lt.s32.totalorder %s16, 3
    %p267 = pnand %p265, %p266
    %p268 = pneg %p267
    // Predicated region
    $region9: #{dwaspp_lite_forward.1} parent=5 // pred_check
      _
    $region10: #{dwaspp_lite_forward.1} parent=5 // pred_check_branch
      %270 = sbr.rel (%p267) target = $region12
    $region11: #{dwaspp_lite_forward.1} parent=5 // pred_region
      %s271 = ssub.s32 %s16, 1
      // Predicated region
      $region13: #{dwaspp_lite_forward.1} parent=11 // pred_check
        %p272 = pneg %p63
      $region14: #{dwaspp_lite_forward.1} parent=11 // pred_check_branch
        %274 = sbr.rel (%p272) target = $region16
      $region15: #{dwaspp_lite_forward.1} parent=11 // pred_region
        _
      $region16: #{dwaspp_lite_forward.1} parent=11 // pred_fallthru
        _
      // Predicated region
      $region17: #{dwaspp_lite_forward.1} parent=11 // pred_check
        %p275 = pneg %p84
      $region18: #{dwaspp_lite_forward.1} parent=11 // pred_check_branch
        %277 = sbr.rel (%p275) target = $region20
      $region19: #{dwaspp_lite_forward.1} parent=11 // pred_region
        _
      $region20: #{dwaspp_lite_forward.1} parent=11 // pred_fallthru
        _
      // Predicated region
      $region21: #{dwaspp_lite_forward.1} parent=11 // pred_check
        %p278 = pneg %p105
      $region22: #{dwaspp_lite_forward.1} parent=11 // pred_check_branch
        %280 = sbr.rel (%p278) target = $region24
      $region23: #{dwaspp_lite_forward.1} parent=11 // pred_region
        _
      $region24: #{dwaspp_lite_forward.1} parent=11 // pred_fallthru
        _
      // Predicated region
      $region25: #{dwaspp_lite_forward.1} parent=11 // pred_check
        %p281 = pneg %p126
      $region26: #{dwaspp_lite_forward.1} parent=11 // pred_check_branch
        %283 = sbr.rel (%p281) target = $region28
      $region27: #{dwaspp_lite_forward.1} parent=11 // pred_region
        _
      $region28: #{dwaspp_lite_forward.1} parent=11 // pred_fallthru
        _
      // Predicated region
      $region29: #{dwaspp_lite_forward.1} parent=11 // pred_check
        %p284 = pneg %p147
      $region30: #{dwaspp_lite_forward.1} parent=11 // pred_check_branch
        %286 = sbr.rel (%p284) target = $region32
      $region31: #{dwaspp_lite_forward.1} parent=11 // pred_region
        _
      $region32: #{dwaspp_lite_forward.1} parent=11 // pred_fallthru
        _
      // Predicated region
      $region33: #{dwaspp_lite_forward.1} parent=11 // pred_check
        %p287 = pneg %p168
      $region34: #{dwaspp_lite_forward.1} parent=11 // pred_check_branch
        %289 = sbr.rel (%p287) target = $region36
      $region35: #{dwaspp_lite_forward.1} parent=11 // pred_region
        _
      $region36: #{dwaspp_lite_forward.1} parent=11 // pred_fallthru
        _
      // Predicated region
      $region37: #{dwaspp_lite_forward.1} parent=11 // pred_check
        %p290 = pneg %p189
      $region38: #{dwaspp_lite_forward.1} parent=11 // pred_check_branch
        %292 = sbr.rel (%p290) target = $region40
      $region39: #{dwaspp_lite_forward.1} parent=11 // pred_region
        _
      $region40: #{dwaspp_lite_forward.1} parent=11 // pred_fallthru
        _
      // Predicated region
      $region41: #{dwaspp_lite_forward.1} parent=11 // pred_check
        %p293 = pneg %p210
      $region42: #{dwaspp_lite_forward.1} parent=11 // pred_check_branch
        %295 = sbr.rel (%p293) target = $region44
      $region43: #{dwaspp_lite_forward.1} parent=11 // pred_region
        _
      $region44: #{dwaspp_lite_forward.1} parent=11 // pred_fallthru
        _
      // Predicated region
      $region45: #{dwaspp_lite_forward.1} parent=11 // pred_check
        %p296 = pneg %p231
      $region46: #{dwaspp_lite_forward.1} parent=11 // pred_check_branch
        %298 = sbr.rel (%p296) target = $region48
      $region47: #{dwaspp_lite_forward.1} parent=11 // pred_region
        _
      $region48: #{dwaspp_lite_forward.1} parent=11 // pred_fallthru
        _
    $region12: #{dwaspp_lite_forward.1} parent=5 // pred_fallthru
      _
    %p299 = scmp.lt.s32.totalorder %s16, 2
    // Predicated region
    $region49: #{dwaspp_lite_forward.1} parent=5 // pred_check
      %p300 = pneg %p299
    $region50: #{dwaspp_lite_forward.1} parent=5 // pred_check_branch
      %302 = sbr.rel (%p300) target = $region52
    $region51: #{dwaspp_lite_forward.1} parent=5 // pred_region
      // Predicated region
      $region53: #{dwaspp_lite_forward.1} parent=51 // pred_check
        %p303 = pneg %p36
      $region54: #{dwaspp_lite_forward.1} parent=51 // pred_check_branch
        %305 = sbr.rel (%p303) target = $region56
      $region55: #{dwaspp_lite_forward.1} parent=51 // pred_region
        %p306 = scmp.lt.s32.totalorder %s16, 1
        %s307 = scalar_select %p306, %s16, 1
        %s308 = smul.addr %s307, 7
        %s309 = smul.addr %s308, 4
        %s310 = scalar_lea.vmem %s0, %s309
      $region56: #{dwaspp_lite_forward.1} parent=51 // pred_fallthru
        _
    $region52: #{dwaspp_lite_forward.1} parent=5 // pred_fallthru
      _
    %p311 = scmp.le.s32.totalorder 1, %s16
    %p312 = scmp.lt.s32.totalorder %s16, 3
    %p313 = pnand %p311, %p312
    %p314 = pneg %p313
    // Predicated region
    $region57: #{dwaspp_lite_forward.1} parent=5 // pred_check
      _
    $region58: #{dwaspp_lite_forward.1} parent=5 // pred_check_branch
      %316 = sbr.rel (%p313) target = $region60
    $region59: #{dwaspp_lite_forward.1} parent=5 // pred_region
      %s317 = ssub.s32 %s16, 1
      %p318 = scmp.lt.s32.totalorder %s21, 1
      %s319 = scalar_select %p318, %s21, 1
      %s320 = smul.addr %s319, 7
      %s321 = smul.addr %s320, 4
      %s322 = scalar_lea.vmem %s0, %s321
      %p323 = pneg %p42
      %p324 = pneg %p39
      %p325 = pneg %p63
      %p326 = pneg %p60
      %p327 = pneg %p84
      %p328 = pneg %p81
      %p329 = pneg %p105
      %p330 = pneg %p102
      %p331 = pneg %p126
      %p332 = pneg %p123
      %p333 = pneg %p147
      %p334 = pneg %p144
      %p335 = pneg %p168
      %p336 = pneg %p165
      %p337 = pneg %p189
      %p338 = pneg %p186
      %p339 = pneg %p210
      %p340 = pneg %p207
      %p341 = pneg %p231
      %p342 = pneg %p228
      %p343 = pneg %p257
      %p344 = pneg %p254
      %p345 = scmp.lt.s32.totalorder %s21, 1
      %s346 = scalar_select %p345, %s21, 1
      %s347 = smul.addr %s346, 2
      %s348 = smul.addr %s347, 8
      %s349 = scalar_lea.vmem %s10, %s348
      %p350 = scmp.lt.s32.totalorder %s21, 1
      %s351 = scalar_select %p350, %s21, 1
      %s352 = smul.addr %s351, 7
      %s353 = smul.addr %s352, 4
      %s354 = scalar_lea.vmem %s0, %s353
      %p355 = scmp.lt.s32.totalorder %s21, 1
      %s356 = scalar_select %p355, %s21, 1
      %s357 = smul.addr %s356, 2
      %s358 = smul.addr %s357, 8
      %s359 = scalar_lea.vmem %s10, %s358
      %v360 = vld [vmem:[%s354 + $0x8] sm:$0xff]
      %v361 = vld [vmem:[%s354 + $0x10] sm:$0xf]
      %v362 = vld [vmem:[%s2] sm:$0xff]
      %v363 = vld [vmem:[%s3] sm:$0xff]
      %365 = vset.pattern.permute.xlu0 0
      %366 = vperm.xlu0 %365, %v363
      %v367 = vpop.permute.xlu0 %366
      %371 = vst [vmem:[#allocation1] ss:$2 sm:$0xff] %v360
      %s372 = scalar_lea.vmem [#allocation1], 16
      %373 = vst [vmem:[%s372] ss:$2 sm:$0xff] %v361
      %v374 = vld.sshfl [vmem:[#allocation1] sm:$0xff pattern:$0x75316420]
      %v375 = vld.sshfl [vmem:[#allocation1 + $0x8] sm:$0xff pattern:$0x75316420]
      %v376 = vld.sshfl [vmem:[#allocation1 + $0x10] sm:$0xff pattern:$0x75316420]
      %377 = vrot.lane.b32.xlu0 %v374, 78
      %v378 = vpop.permute.xlu0 %377
      %379 = vrot.lane.b32.xlu0 %v375, 78
      %v380 = vpop.permute.xlu0 %379
      %381 = vrot.lane.b32.xlu0 %v376, 78
      %v382 = vpop.permute.xlu0 %381
      %vm383 = vcmask 637952
      %v384 = vsel %vm383, %v378, %v380
      %v385 = vsel %vm383, %v380, %v382
      %vm386 = vcmask 31744
      %v388 = vsel %vm386, %v362, 0
      %vm390 = vcmask 1043456
      %v391 = vsel %vm390, %v384, 0
      %v393 = vsel %vm390, %v385, 0
      %395 = vmatpush.msra.mxu0 0.0
      %396 = vmatpush.msra.mxu0 0.0
      %397 = vmatpush.msra.mxu0 0.0
      %398 = vmatpush.msra.mxu0 0.0
      %399 = vmatpush.msra.mxu0 0.0
      %400 = vmatpush.msra.mxu0 0.0
      %401 = vmatpush.msra.mxu0 0.0
      %402 = vmatpush.msra.mxu0 0.0
      %403 = vmatpush.msra.mxu0 0.0
      %404 = vmatpush.msra.mxu0 0.0
      %405 = vmatpush.msra.mxu0 0.0
      %406 = vmatpush.msra.mxu0 0.0
      %407 = vmatpush.msra.mxu0 0.0
      %408 = vmatpush.msra.mxu0 0.0
      %409 = vmatpush.msra.mxu0 0.0
      %410 = vmatpush.msra.mxu0 %v391
      %411 = vmatmul.f32.gmra.mxu0 %v388
      %v412 = vpop.f32.mrf.mxu0
      %v413 = vadd.f32 %v367, %v412
      %414 = vdwg.mxu0
      %415 = vmatpush.msra.mxu0 0.0
      %416 = vmatpush.msra.mxu0 0.0
      %417 = vmatpush.msra.mxu0 0.0
      %418 = vmatpush.msra.mxu0 0.0
      %419 = vmatpush.msra.mxu0 0.0
      %420 = vmatpush.msra.mxu0 0.0
      %421 = vmatpush.msra.mxu0 0.0
      %422 = vmatpush.msra.mxu0 0.0
      %423 = vmatpush.msra.mxu0 0.0
      %424 = vmatpush.msra.mxu0 0.0
      %425 = vmatpush.msra.mxu0 0.0
      %426 = vmatpush.msra.mxu0 0.0
      %427 = vmatpush.msra.mxu0 0.0
      %428 = vmatpush.msra.mxu0 0.0
      %429 = vmatpush.msra.mxu0 0.0
      %430 = vmatpush.msra.mxu0 %v393
      %431 = vmatmul.f32.gmra.mxu0 %v388
      %v432 = vpop.f32.mrf.mxu0
      %v433 = vadd.f32 %v367, %v432
      %434 = vdwg.mxu0
      %v435 = vmax.f32 %v413, 0.0
      %v436 = vmax.f32 %v433, 0.0
      %v437 = vld [vmem:[%s8] sm:$0xff]
      %v438 = vld [vmem:[%s354 + $0x4] sm:$0xff]
      %v439 = vld [vmem:[%s354 + $0xc] sm:$0xf]
      %v440 = vld [vmem:[%s1] ss:$8 sm:$0x3]
      %v441 = vld [vmem:[%s4] sm:$0xf]
      %v443 = vperm.slane %v440, 0
      %v444 = vperm.slane %v440, 1
      %v445 = vrot.slane %v444, 4
      %v446 = vsel %vm390, %v443, %v445
      %447 = vrot.lane.b32.xlu0 %v446, 76
      %v448 = vpop.permute.xlu0 %447
      %v449 = vrot.slane %v448, 4
      %vm450 = vcmask 621568
      %v451 = vsel %vm450, %v449, %v448
      %v454 = vmul.f32 %v438, %v451
      %v455 = vmul.f32 %v439, %v449
      %457 = vset.pattern.permute.xlu0 0
      %458 = vperm.xlu0 %457, %v441
      %v459 = vpop.permute.xlu0 %458
      %463 = vst [vmem:[#allocation1] ss:$2 sm:$0xff] %v454
      %s464 = scalar_lea.vmem [#allocation1], 16
      %465 = vst [vmem:[%s464] ss:$2 sm:$0xff] %v455
      %v466 = vld.sshfl [vmem:[#allocation1] sm:$0xff pattern:$0x75316420]
      %v467 = vld.sshfl [vmem:[#allocation1 + $0x8] sm:$0xff pattern:$0x75316420]
      %v468 = vld.sshfl [vmem:[#allocation1 + $0x10] sm:$0xff pattern:$0x75316420]
      %469 = vrot.lane.b32.xlu0 %v466, 52
      %v470 = vpop.permute.xlu0 %469
      %471 = vrot.lane.b32.xlu0 %v467, 52
      %v472 = vpop.permute.xlu0 %471
      %473 = vrot.lane.b32.xlu0 %v468, 52
      %v474 = vpop.permute.xlu0 %473
      %vm475 = vcmask 424960
      %v476 = vsel %vm475, %v470, %v472
      %v477 = vsel %vm475, %v472, %v474
      %v480 = vmul.f32 %v459, %v476
      %v481 = vmul.f32 %v459, %v477
      %v482 = vadd.f32 %v480, 0.0
      %v483 = vadd.f32 %v481, 0.0
      %v484 = vld [vmem:[%s354 + $0x4] sm:$0xff]
      %v485 = vld [vmem:[%s354 + $0xc] sm:$0xf]
      %s486 = scalar_lea.vmem %s1, 1
      %v487 = vld [vmem:[%s486] ss:$8 sm:$0x3]
      %v488 = vld [vmem:[%s4] sm:$0xf]
      %v490 = vperm.slane %v487, 0
      %v491 = vperm.slane %v487, 1
      %v492 = vrot.slane %v491, 4
      %v493 = vsel %vm390, %v490, %v492
      %494 = vrot.lane.b32.xlu0 %v493, 82
      %v495 = vpop.permute.xlu0 %494
      %v496 = vrot.slane %v495, 4
      %vm497 = vcmask 670720
      %v498 = vsel %vm497, %v496, %v495
      %v501 = vmul.f32 %v484, %v498
      %v502 = vmul.f32 %v485, %v496
      %504 = vset.pattern.permute.xlu0 1
      %505 = vperm.xlu0 %504, %v488
      %v506 = vpop.permute.xlu0 %505
      %510 = vst [vmem:[#allocation1] ss:$2 sm:$0xff] %v501
      %s511 = scalar_lea.vmem [#allocation1], 16
      %512 = vst [vmem:[%s511] ss:$2 sm:$0xff] %v502
      %v513 = vld.sshfl [vmem:[#allocation1] sm:$0xff pattern:$0x75316420]
      %v514 = vld.sshfl [vmem:[#allocation1 + $0x8] sm:$0xff pattern:$0x75316420]
      %v515 = vld.sshfl [vmem:[#allocation1 + $0x10] sm:$0xff pattern:$0x75316420]
      %516 = vrot.lane.b32.xlu0 %v513, 46
      %v517 = vpop.permute.xlu0 %516
      %518 = vrot.lane.b32.xlu0 %v514, 46
      %v519 = vpop.permute.xlu0 %518
      %520 = vrot.lane.b32.xlu0 %v515, 46
      %v521 = vpop.permute.xlu0 %520
      %vm522 = vcmask 375808
      %v523 = vsel %vm522, %v517, %v519
      %v524 = vsel %vm522, %v519, %v521
      %v527 = vmul.f32 %v506, %v523
      %v528 = vmul.f32 %v506, %v524
      %v529 = vadd.f32 %v482, %v527
      %v530 = vadd.f32 %v483, %v528
      %v531 = vld [vmem:[%s354 + $0x4] sm:$0xff]
      %v532 = vld [vmem:[%s354 + $0xc] sm:$0xf]
      %s533 = scalar_lea.vmem %s1, 2
      %v534 = vld [vmem:[%s533] ss:$8 sm:$0x3]
      %v535 = vld [vmem:[%s4] sm:$0xf]
      %v537 = vperm.slane %v534, 0
      %v538 = vperm.slane %v534, 1
      %v539 = vrot.slane %v538, 4
      %v540 = vsel %vm390, %v537, %v539
      %541 = vrot.lane.b32.xlu0 %v540, 88
      %v542 = vpop.permute.xlu0 %541
      %v543 = vrot.slane %v542, 4
      %vm544 = vcmask 719872
      %v545 = vsel %vm544, %v543, %v542
      %v548 = vmul.f32 %v531, %v545
      %v549 = vmul.f32 %v532, %v543
      %551 = vset.pattern.permute.xlu0 2
      %552 = vperm.xlu0 %551, %v535
      %v553 = vpop.permute.xlu0 %552
      %557 = vst [vmem:[#allocation1] ss:$2 sm:$0xff] %v548
      %s558 = scalar_lea.vmem [#allocation1], 16
      %559 = vst [vmem:[%s558] ss:$2 sm:$0xff] %v549
      %v560 = vld.sshfl [vmem:[#allocation1] sm:$0xff pattern:$0x75316420]
      %v561 = vld.sshfl [vmem:[#allocation1 + $0x8] sm:$0xff pattern:$0x75316420]
      %v562 = vld.sshfl [vmem:[#allocation1 + $0x10] sm:$0xff pattern:$0x75316420]
      %563 = vrot.lane.b32.xlu0 %v560, 40
      %v564 = vpop.permute.xlu0 %563
      %565 = vrot.lane.b32.xlu0 %v561, 40
      %v566 = vpop.permute.xlu0 %565
      %567 = vrot.lane.b32.xlu0 %v562, 40
      %v568 = vpop.permute.xlu0 %567
      %vm569 = vcmask 326656
      %v570 = vsel %vm569, %v564, %v566
      %v571 = vsel %vm569, %v566, %v568
      %v574 = vmul.f32 %v553, %v570
      %v575 = vmul.f32 %v553, %v571
      %v576 = vadd.f32 %v529, %v574
      %v577 = vadd.f32 %v530, %v575
      %v578 = vld [vmem:[%s354 + $0x8] sm:$0xff]
      %v579 = vld [vmem:[%s354 + $0x10] sm:$0xf]
      %s580 = scalar_lea.vmem %s1, 3
      %v581 = vld [vmem:[%s580] ss:$8 sm:$0x3]
      %v582 = vld [vmem:[%s4] sm:$0xf]
      %v584 = vperm.slane %v581, 0
      %v585 = vperm.slane %v581, 1
      %v586 = vrot.slane %v585, 4
      %v587 = vsel %vm390, %v584, %v586
      %588 = vrot.lane.b32.xlu0 %v587, 44
      %v589 = vpop.permute.xlu0 %588
      %v590 = vrot.slane %v589, 4
      %vm591 = vcmask 359424
      %v592 = vsel %vm591, %v590, %v589
      %v595 = vmul.f32 %v578, %v592
      %v596 = vmul.f32 %v579, %v590
      %598 = vset.pattern.permute.xlu0 3
      %599 = vperm.xlu0 %598, %v582
      %v600 = vpop.permute.xlu0 %599
      %604 = vst [vmem:[#allocation1] ss:$2 sm:$0xff] %v595
      %s605 = scalar_lea.vmem [#allocation1], 16
      %606 = vst [vmem:[%s605] ss:$2 sm:$0xff] %v596
      %v607 = vld.sshfl [vmem:[#allocation1] sm:$0xff pattern:$0x75316420]
      %v608 = vld.sshfl [vmem:[#allocation1 + $0x8] sm:$0xff pattern:$0x75316420]
      %v609 = vld.sshfl [vmem:[#allocation1 + $0x10] sm:$0xff pattern:$0x75316420]
      %610 = vrot.lane.b32.xlu0 %v607, 84
      %v611 = vpop.permute.xlu0 %610
      %612 = vrot.lane.b32.xlu0 %v608, 84
      %v613 = vpop.permute.xlu0 %612
      %614 = vrot.lane.b32.xlu0 %v609, 84
      %v615 = vpop.permute.xlu0 %614
      %vm616 = vcmask 687104
      %v617 = vsel %vm616, %v611, %v613
      %v618 = vsel %vm616, %v613, %v615
      %v621 = vmul.f32 %v600, %v617
      %v622 = vmul.f32 %v600, %v618
      %v623 = vadd.f32 %v576, %v621
      %v624 = vadd.f32 %v577, %v622
      %s625 = scalar_lea.vmem %s1, 4
      %v626 = vld [vmem:[%s625] ss:$8 sm:$0x3]
      %v627 = vld [vmem:[%s4] sm:$0xf]
      %v629 = vperm.slane %v626, 0
      %v630 = vperm.slane %v626, 1
      %v631 = vrot.slane %v630, 4
      %v632 = vsel %vm390, %v629, %v631
      %633 = vrot.lane.b32.xlu0 %v632, 50
      %v634 = vpop.permute.xlu0 %633
      %v635 = vrot.slane %v634, 4
      %vm636 = vcmask 408576
      %v637 = vsel %vm636, %v635, %v634
      %v640 = vmul.f32 %v360, %v637
      %v641 = vmul.f32 %v361, %v635
      %643 = vset.pattern.permute.xlu0 4
      %644 = vperm.xlu0 %643, %v627
      %v645 = vpop.permute.xlu0 %644
      %649 = vst [vmem:[#allocation1] ss:$2 sm:$0xff] %v640
      %s650 = scalar_lea.vmem [#allocation1], 16
      %651 = vst [vmem:[%s650] ss:$2 sm:$0xff] %v641
      %v652 = vld.sshfl [vmem:[#allocation1] sm:$0xff pattern:$0x75316420]
      %v653 = vld.sshfl [vmem:[#allocation1 + $0x8] sm:$0xff pattern:$0x75316420]
      %v654 = vld.sshfl [vmem:[#allocation1 + $0x10] sm:$0xff pattern:$0x75316420]
      %655 = vrot.lane.b32.xlu0 %v652, 78
      %v656 = vpop.permute.xlu0 %655
      %657 = vrot.lane.b32.xlu0 %v653, 78
      %v658 = vpop.permute.xlu0 %657
      %659 = vrot.lane.b32.xlu0 %v654, 78
      %v660 = vpop.permute.xlu0 %659
      %v661 = vsel %vm383, %v656, %v658
      %v662 = vsel %vm383, %v658, %v660
      %v665 = vmul.f32 %v645, %v661
      %v666 = vmul.f32 %v645, %v662
      %v667 = vadd.f32 %v623, %v665
      %v668 = vadd.f32 %v624, %v666
      %v669 = vld [vmem:[%s354 + $0x8] sm:$0xff]
      %v670 = vld [vmem:[%s354 + $0x10] sm:$0xf]
      %s671 = scalar_lea.vmem %s1, 5
      %v672 = vld [vmem:[%s671] ss:$8 sm:$0x3]
      %v673 = vld [vmem:[%s4] sm:$0xf]
      %v675 = vperm.slane %v672, 0
      %v676 = vperm.slane %v672, 1
      %v677 = vrot.slane %v676, 4
      %v678 = vsel %vm390, %v675, %v677
      %679 = vrot.lane.b32.xlu0 %v678, 56
      %v680 = vpop.permute.xlu0 %679
      %v681 = vrot.slane %v680, 4
      %vm682 = vcmask 457728
      %v683 = vsel %vm682, %v681, %v680
      %v686 = vmul.f32 %v669, %v683
      %v687 = vmul.f32 %v670, %v681
      %689 = vset.pattern.permute.xlu0 5
      %690 = vperm.xlu0 %689, %v673
      %v691 = vpop.permute.xlu0 %690
      %695 = vst [vmem:[#allocation1] ss:$2 sm:$0xff] %v686
      %s696 = scalar_lea.vmem [#allocation1], 16
      %697 = vst [vmem:[%s696] ss:$2 sm:$0xff] %v687
      %v698 = vld.sshfl [vmem:[#allocation1] sm:$0xff pattern:$0x75316420]
      %v699 = vld.sshfl [vmem:[#allocation1 + $0x8] sm:$0xff pattern:$0x75316420]
      %v700 = vld.sshfl [vmem:[#allocation1 + $0x10] sm:$0xff pattern:$0x75316420]
      %701 = vrot.lane.b32.xlu0 %v698, 72
      %v702 = vpop.permute.xlu0 %701
      %703 = vrot.lane.b32.xlu0 %v699, 72
      %v704 = vpop.permute.xlu0 %703
      %705 = vrot.lane.b32.xlu0 %v700, 72
      %v706 = vpop.permute.xlu0 %705
      %vm707 = vcmask 588800
      %v708 = vsel %vm707, %v702, %v704
      %v709 = vsel %vm707, %v704, %v706
      %v712 = vmul.f32 %v691, %v708
      %v713 = vmul.f32 %v691, %v709
      %v714 = vadd.f32 %v667, %v712
      %v715 = vadd.f32 %v668, %v713
      %v716 = vld [vmem:[%s354 + $0xc] sm:$0xff]
      %v717 = vld [vmem:[%s354 + $0x14] sm:$0xf]
      %s718 = scalar_lea.vmem %s1, 6
      %v719 = vld [vmem:[%s718] ss:$8 sm:$0x3]
      %v720 = vld [vmem:[%s4] sm:$0xf]
      %v722 = vperm.slane %v719, 0
      %v723 = vperm.slane %v719, 1
      %v724 = vrot.slane %v723, 4
      %v725 = vsel %vm390, %v722, %v724
      %726 = vrot.lane.b32.xlu0 %v725, 12
      %v727 = vpop.permute.xlu0 %726
      %v728 = vrot.slane %v727, 4
      %vm729 = vcmask 97280
      %v730 = vsel %vm729, %v728, %v727
      %v733 = vmul.f32 %v716, %v730
      %v734 = vmul.f32 %v717, %v728
      %736 = vset.pattern.permute.xlu0 6
      %737 = vperm.xlu0 %736, %v720
      %v738 = vpop.permute.xlu0 %737
      %742 = vst [vmem:[#allocation1] ss:$2 sm:$0xff] %v733
      %s743 = scalar_lea.vmem [#allocation1], 16
      %744 = vst [vmem:[%s743] ss:$2 sm:$0xff] %v734
      %v745 = vld.sshfl [vmem:[#allocation1] sm:$0xff pattern:$0x75316420]
      %v746 = vld.sshfl [vmem:[#allocation1 + $0x8] sm:$0xff pattern:$0x75316420]
      %v747 = vld.sshfl [vmem:[#allocation1 + $0x10] sm:$0xff pattern:$0x75316420]
      %748 = vrot.lane.b32.xlu0 %v745, 116
      %v749 = vpop.permute.xlu0 %748
      %750 = vrot.lane.b32.xlu0 %v746, 116
      %v751 = vpop.permute.xlu0 %750
      %752 = vrot.lane.b32.xlu0 %v747, 116
      %v753 = vpop.permute.xlu0 %752
      %vm754 = vcmask 949248
      %v755 = vsel %vm754, %v749, %v751
      %v756 = vsel %vm754, %v751, %v753
      %v759 = vmul.f32 %v738, %v755
      %v760 = vmul.f32 %v738, %v756
      %v761 = vadd.f32 %v714, %v759
      %v762 = vadd.f32 %v715, %v760
      %v763 = vld [vmem:[%s354 + $0xc] sm:$0xff]
      %v764 = vld [vmem:[%s354 + $0x14] sm:$0xf]
      %s765 = scalar_lea.vmem %s1, 7
      %v766 = vld [vmem:[%s765] ss:$8 sm:$0x3]
      %v767 = vld [vmem:[%s4] sm:$0xf]
      %v769 = vperm.slane %v766, 0
      %v770 = vperm.slane %v766, 1
      %v771 = vrot.slane %v770, 4
      %v772 = vsel %vm390, %v769, %v771
      %773 = vrot.lane.b32.xlu0 %v772, 18
      %v774 = vpop.permute.xlu0 %773
      %v775 = vrot.slane %v774, 4
      %vm776 = vcmask 146432
      %v777 = vsel %vm776, %v775, %v774
      %v780 = vmul.f32 %v763, %v777
      %v781 = vmul.f32 %v764, %v775
      %783 = vset.pattern.permute.xlu0 7
      %784 = vperm.xlu0 %783, %v767
      %v785 = vpop.permute.xlu0 %784
      %789 = vst [vmem:[#allocation1] ss:$2 sm:$0xff] %v780
      %s790 = scalar_lea.vmem [#allocation1], 16
      %791 = vst [vmem:[%s790] ss:$2 sm:$0xff] %v781
      %v792 = vld.sshfl [vmem:[#allocation1] sm:$0xff pattern:$0x75316420]
      %v793 = vld.sshfl [vmem:[#allocation1 + $0x8] sm:$0xff pattern:$0x75316420]
      %v794 = vld.sshfl [vmem:[#allocation1 + $0x10] sm:$0xff pattern:$0x75316420]
      %795 = vrot.lane.b32.xlu0 %v792, 110
      %v796 = vpop.permute.xlu0 %795
      %797 = vrot.lane.b32.xlu0 %v793, 110
      %v798 = vpop.permute.xlu0 %797
      %799 = vrot.lane.b32.xlu0 %v794, 110
      %v800 = vpop.permute.xlu0 %799
      %vm801 = vcmask 900096
      %v802 = vsel %vm801, %v796, %v798
      %v803 = vsel %vm801, %v798, %v800
      %v806 = vmul.f32 %v785, %v802
      %v807 = vmul.f32 %v785, %v803
      %v808 = vadd.f32 %v761, %v806
      %v809 = vadd.f32 %v762, %v807
      %v810 = vld [vmem:[%s354 + $0xc] sm:$0xff]
      %v811 = vld [vmem:[%s354 + $0x14] sm:$0xf]
      %s812 = scalar_lea.vmem %s1, 16
      %v813 = vld [vmem:[%s812] ss:$8 sm:$0x3]
      %v814 = vld [vmem:[%s4] sm:$0xf]
      %v816 = vperm.slane %v813, 0
      %v817 = vperm.slane %v813, 1
      %v818 = vrot.slane %v817, 4
      %v819 = vsel %vm390, %v816, %v818
      %820 = vrot.lane.b32.xlu0 %v819, 24
      %v821 = vpop.permute.xlu0 %820
      %v822 = vrot.slane %v821, 4
      %vm823 = vcmask 195584
      %v824 = vsel %vm823, %v822, %v821
      %v827 = vmul.f32 %v810, %v824
      %v828 = vmul.f32 %v811, %v822
      %830 = vset.pattern.permute.xlu0 8
      %831 = vperm.xlu0 %830, %v814
      %v832 = vpop.permute.xlu0 %831
      %836 = vst [vmem:[#allocation1] ss:$2 sm:$0xff] %v827
      %s837 = scalar_lea.vmem [#allocation1], 16
      %838 = vst [vmem:[%s837] ss:$2 sm:$0xff] %v828
      %v839 = vld.sshfl [vmem:[#allocation1] sm:$0xff pattern:$0x75316420]
      %v840 = vld.sshfl [vmem:[#allocation1 + $0x8] sm:$0xff pattern:$0x75316420]
      %v841 = vld.sshfl [vmem:[#allocation1 + $0x10] sm:$0xff pattern:$0x75316420]
      %842 = vrot.lane.b32.xlu0 %v839, 104
      %v843 = vpop.permute.xlu0 %842
      %844 = vrot.lane.b32.xlu0 %v840, 104
      %v845 = vpop.permute.xlu0 %844
      %846 = vrot.lane.b32.xlu0 %v841, 104
      %v847 = vpop.permute.xlu0 %846
      %vm848 = vcmask 850944
      %v849 = vsel %vm848, %v843, %v845
      %v850 = vsel %vm848, %v845, %v847
      %v853 = vmul.f32 %v832, %v849
      %v854 = vmul.f32 %v832, %v850
      %v855 = vadd.f32 %v808, %v853
      %v856 = vadd.f32 %v809, %v854
      %v857 = vld [vmem:[%s5] sm:$0xf]
      %859 = vset.pattern.permute.xlu0 0
      %860 = vperm.xlu0 %859, %v857
      %v861 = vpop.permute.xlu0 %860
      %v863 = vadd.f32 %v855, %v861
      %v864 = vadd.f32 %v856, %v861
      %v865 = vmax.f32 %v863, 0.0
      %v866 = vmax.f32 %v864, 0.0
      %v867 = vld [vmem:[%s6] sm:$0xff]
      %v868 = vld [vmem:[%s7] sm:$0xff]
      %870 = vset.pattern.permute.xlu0 0
      %871 = vperm.xlu0 %870, %v868
      %v872 = vpop.permute.xlu0 %871
      %v875 = vsel %vm386, %v867, 0
      %v878 = vsel %vm390, %v865, 0
      %v881 = vsel %vm390, %v866, 0
      %883 = vmatpush.msra.mxu0 0.0
      %884 = vmatpush.msra.mxu0 0.0
      %885 = vmatpush.msra.mxu0 0.0
      %886 = vmatpush.msra.mxu0 0.0
      %887 = vmatpush.msra.mxu0 0.0
      %888 = vmatpush.msra.mxu0 0.0
      %889 = vmatpush.msra.mxu0 0.0
      %890 = vmatpush.msra.mxu0 0.0
      %891 = vmatpush.msra.mxu0 0.0
      %892 = vmatpush.msra.mxu0 0.0
      %893 = vmatpush.msra.mxu0 0.0
      %894 = vmatpush.msra.mxu0 0.0
      %895 = vmatpush.msra.mxu0 0.0
      %896 = vmatpush.msra.mxu0 0.0
      %897 = vmatpush.msra.mxu0 0.0
      %898 = vmatpush.msra.mxu0 %v878
      %899 = vmatmul.f32.gmra.mxu0 %v875
      %v900 = vpop.f32.mrf.mxu0
      %v901 = vadd.f32 %v872, %v900
      %902 = vdwg.mxu0
      %903 = vmatpush.msra.mxu0 0.0
      %904 = vmatpush.msra.mxu0 0.0
      %905 = vmatpush.msra.mxu0 0.0
      %906 = vmatpush.msra.mxu0 0.0
      %907 = vmatpush.msra.mxu0 0.0
      %908 = vmatpush.msra.mxu0 0.0
      %909 = vmatpush.msra.mxu0 0.0
      %910 = vmatpush.msra.mxu0 0.0
      %911 = vmatpush.msra.mxu0 0.0
      %912 = vmatpush.msra.mxu0 0.0
      %913 = vmatpush.msra.mxu0 0.0
      %914 = vmatpush.msra.mxu0 0.0
      %915 = vmatpush.msra.mxu0 0.0
      %916 = vmatpush.msra.mxu0 0.0
      %917 = vmatpush.msra.mxu0 0.0
      %918 = vmatpush.msra.mxu0 %v881
      %919 = vmatmul.f32.gmra.mxu0 %v875
      %v920 = vpop.f32.mrf.mxu0
      %v921 = vadd.f32 %v872, %v920
      %922 = vdwg.mxu0
      %v923 = vmax.f32 %v901, 0.0
      %v924 = vmax.f32 %v921, 0.0
      %v925 = vld [vmem:[%s8] sm:$0xff]
      %927 = vrot.lane.b32.xlu0 %v925, 120
      %v928 = vpop.permute.xlu0 %927
      %vm929 = vcmask 64512
      %v930 = vsel %vm929, %v928, 0
      %932 = vmatpush.msra.mxu0 0.0
      %933 = vmatpush.msra.mxu0 0.0
      %934 = vmatpush.msra.mxu0 0.0
      %935 = vmatpush.msra.mxu0 0.0
      %936 = vmatpush.msra.mxu0 0.0
      %937 = vmatpush.msra.mxu0 0.0
      %938 = vmatpush.msra.mxu0 0.0
      %939 = vmatpush.msra.mxu0 0.0
      %940 = vmatpush.msra.mxu0 0.0
      %941 = vmatpush.msra.mxu0 0.0
      %942 = vmatpush.msra.mxu0 0.0
      %943 = vmatpush.msra.mxu0 0.0
      %944 = vmatpush.msra.mxu0 0.0
      %945 = vmatpush.msra.mxu0 0.0
      %946 = vmatpush.msra.mxu0 0.0
      %947 = vmatpush.msra.mxu0 %v923
      %948 = vmatmul.f32.gmra.mxu0 %v930
      %v949 = vpop.f32.mrf.mxu0
      %v950 = vadd.f32 0.0, %v949
      %951 = vdwg.mxu0
      %952 = vmatpush.msra.mxu0 0.0
      %953 = vmatpush.msra.mxu0 0.0
      %954 = vmatpush.msra.mxu0 0.0
      %955 = vmatpush.msra.mxu0 0.0
      %956 = vmatpush.msra.mxu0 0.0
      %957 = vmatpush.msra.mxu0 0.0
      %958 = vmatpush.msra.mxu0 0.0
      %959 = vmatpush.msra.mxu0 0.0
      %960 = vmatpush.msra.mxu0 0.0
      %961 = vmatpush.msra.mxu0 0.0
      %962 = vmatpush.msra.mxu0 0.0
      %963 = vmatpush.msra.mxu0 0.0
      %964 = vmatpush.msra.mxu0 0.0
      %965 = vmatpush.msra.mxu0 0.0
      %966 = vmatpush.msra.mxu0 0.0
      %967 = vmatpush.msra.mxu0 %v924
      %968 = vmatmul.f32.gmra.mxu0 %v930
      %v969 = vpop.f32.mrf.mxu0
      %v970 = vadd.f32 0.0, %v969
      %971 = vdwg.mxu0
      %v973 = vsel %vm929, %v437, 0
      %975 = vmatpush.msra.mxu0 0.0
      %976 = vmatpush.msra.mxu0 0.0
      %977 = vmatpush.msra.mxu0 0.0
      %978 = vmatpush.msra.mxu0 0.0
      %979 = vmatpush.msra.mxu0 0.0
      %980 = vmatpush.msra.mxu0 0.0
      %981 = vmatpush.msra.mxu0 0.0
      %982 = vmatpush.msra.mxu0 0.0
      %983 = vmatpush.msra.mxu0 0.0
      %984 = vmatpush.msra.mxu0 0.0
      %985 = vmatpush.msra.mxu0 0.0
      %986 = vmatpush.msra.mxu0 0.0
      %987 = vmatpush.msra.mxu0 0.0
      %988 = vmatpush.msra.mxu0 0.0
      %989 = vmatpush.msra.mxu0 0.0
      %990 = vmatpush.msra.mxu0 %v435
      %991 = vmatmul.f32.gmra.mxu0 %v973
      %v992 = vpop.f32.mrf.mxu0
      %v993 = vadd.f32 %v950, %v992
      %994 = vdwg.mxu0
      %995 = vmatpush.msra.mxu0 0.0
      %996 = vmatpush.msra.mxu0 0.0
      %997 = vmatpush.msra.mxu0 0.0
      %998 = vmatpush.msra.mxu0 0.0
      %999 = vmatpush.msra.mxu0 0.0
      %1000 = vmatpush.msra.mxu0 0.0
      %1001 = vmatpush.msra.mxu0 0.0
      %1002 = vmatpush.msra.mxu0 0.0
      %1003 = vmatpush.msra.mxu0 0.0
      %1004 = vmatpush.msra.mxu0 0.0
      %1005 = vmatpush.msra.mxu0 0.0
      %1006 = vmatpush.msra.mxu0 0.0
      %1007 = vmatpush.msra.mxu0 0.0
      %1008 = vmatpush.msra.mxu0 0.0
      %1009 = vmatpush.msra.mxu0 0.0
      %1010 = vmatpush.msra.mxu0 %v436
      %1011 = vmatmul.f32.gmra.mxu0 %v973
      %v1012 = vpop.f32.mrf.mxu0
      %v1013 = vadd.f32 %v970, %v1012
      %1014 = vdwg.mxu0
      %v1015 = vld [vmem:[%s354] sm:$0xff]
      %v1016 = vld [vmem:[%s354 + $0x8] sm:$0xf]
      %s1017 = scalar_lea.vmem %s1, 17
      %v1018 = vld [vmem:[%s1017] ss:$8 sm:$0x3]
      %s1019 = scalar_lea.vmem %s4, 4
      %v1020 = vld [vmem:[%s1019] sm:$0xf]
      %v1022 = vperm.slane %v1018, 0
      %v1023 = vperm.slane %v1018, 1
      %v1024 = vrot.slane %v1023, 4
      %v1025 = vsel %vm390, %v1022, %v1024
      %1026 = vrot.lane.b32.xlu0 %v1025, 102
      %v1027 = vpop.permute.xlu0 %1026
      %v1028 = vrot.slane %v1027, 4
      %vm1029 = vcmask 834560
      %v1030 = vsel %vm1029, %v1028, %v1027
      %v1033 = vmul.f32 %v1015, %v1030
      %v1034 = vmul.f32 %v1016, %v1028
      %1036 = vset.pattern.permute.xlu0 0
      %1037 = vperm.xlu0 %1036, %v1020
      %v1038 = vpop.permute.xlu0 %1037
      %1042 = vst [vmem:[#allocation1] ss:$2 sm:$0xff] %v1033
      %s1043 = scalar_lea.vmem [#allocation1], 16
      %1044 = vst [vmem:[%s1043] ss:$2 sm:$0xff] %v1034
      %v1045 = vld.sshfl [vmem:[#allocation1] sm:$0xff pattern:$0x75316420]
      %v1046 = vld.sshfl [vmem:[#allocation1 + $0x8] sm:$0xff pattern:$0x75316420]
      %v1047 = vld.sshfl [vmem:[#allocation1 + $0x10] sm:$0xff pattern:$0x75316420]
      %1048 = vrot.lane.b32.xlu0 %v1045, 26
      %v1049 = vpop.permute.xlu0 %1048
      %1050 = vrot.lane.b32.xlu0 %v1046, 26
      %v1051 = vpop.permute.xlu0 %1050
      %1052 = vrot.lane.b32.xlu0 %v1047, 26
      %v1053 = vpop.permute.xlu0 %1052
      %vm1054 = vcmask 211968
      %v1055 = vsel %vm1054, %v1049, %v1051
      %v1056 = vsel %vm1054, %v1051, %v1053
      %v1059 = vmul.f32 %v1038, %v1055
      %v1060 = vmul.f32 %v1038, %v1056
      %v1061 = vadd.f32 %v1059, 0.0
      %v1062 = vadd.f32 %v1060, 0.0
      %v1063 = vld [vmem:[%s354] sm:$0xff]
      %v1064 = vld [vmem:[%s354 + $0x8] sm:$0xf]
      %s1065 = scalar_lea.vmem %s1, 18
      %v1066 = vld [vmem:[%s1065] ss:$8 sm:$0x3]
      %v1067 = vld [vmem:[%s1019] sm:$0xf]
      %v1069 = vperm.slane %v1066, 0
      %v1070 = vperm.slane %v1066, 1
      %v1071 = vrot.slane %v1070, 4
      %v1072 = vsel %vm390, %v1069, %v1071
      %1073 = vrot.lane.b32.xlu0 %v1072, 114
      %v1074 = vpop.permute.xlu0 %1073
      %v1075 = vrot.slane %v1074, 4
      %vm1076 = vcmask 932864
      %v1077 = vsel %vm1076, %v1075, %v1074
      %v1080 = vmul.f32 %v1063, %v1077
      %v1081 = vmul.f32 %v1064, %v1075
      %1083 = vset.pattern.permute.xlu0 1
      %1084 = vperm.xlu0 %1083, %v1067
      %v1085 = vpop.permute.xlu0 %1084
      %1089 = vst [vmem:[#allocation1] ss:$2 sm:$0xff] %v1080
      %s1090 = scalar_lea.vmem [#allocation1], 16
      %1091 = vst [vmem:[%s1090] ss:$2 sm:$0xff] %v1081
      %v1092 = vld.sshfl [vmem:[#allocation1] sm:$0xff pattern:$0x75316420]
      %v1093 = vld.sshfl [vmem:[#allocation1 + $0x8] sm:$0xff pattern:$0x75316420]
      %v1094 = vld.sshfl [vmem:[#allocation1 + $0x10] sm:$0xff pattern:$0x75316420]
      %1095 = vrot.lane.b32.xlu0 %v1092, 14
      %v1096 = vpop.permute.xlu0 %1095
      %1097 = vrot.lane.b32.xlu0 %v1093, 14
      %v1098 = vpop.permute.xlu0 %1097
      %1099 = vrot.lane.b32.xlu0 %v1094, 14
      %v1100 = vpop.permute.xlu0 %1099
      %vm1101 = vcmask 113664
      %v1102 = vsel %vm1101, %v1096, %v1098
      %v1103 = vsel %vm1101, %v1098, %v1100
      %v1106 = vmul.f32 %v1085, %v1102
      %v1107 = vmul.f32 %v1085, %v1103
      %v1108 = vadd.f32 %v1061, %v1106
      %v1109 = vadd.f32 %v1062, %v1107
      %v1110 = vld [vmem:[%s354] sm:$0xff]
      %v1111 = vld [vmem:[%s354 + $0x8] sm:$0xf]
      %s1112 = scalar_lea.vmem %s1, 19
      %v1113 = vld [vmem:[%s1112] ss:$8 sm:$0x3]
      %v1114 = vld [vmem:[%s1019] sm:$0xf]
      %v1116 = vperm.slane %v1113, 0
      %v1117 = vperm.slane %v1113, 1
      %v1118 = vrot.slane %v1117, 4
      %v1119 = vsel %vm390, %v1116, %v1118
      %1120 = vrot.lane.b32.xlu0 %v1119, 126
      %v1121 = vpop.permute.xlu0 %1120
      %v1122 = vrot.slane %v1121, 4
      %vm1123 = vcmask 1031168
      %v1124 = vsel %vm1123, %v1122, %v1121
      %v1127 = vmul.f32 %v1110, %v1124
      %v1128 = vmul.f32 %v1111, %v1122
      %1130 = vset.pattern.permute.xlu0 2
      %1131 = vperm.xlu0 %1130, %v1114
      %v1132 = vpop.permute.xlu0 %1131
      %1136 = vst [vmem:[#allocation1] ss:$2 sm:$0xff] %v1127
      %s1137 = scalar_lea.vmem [#allocation1], 16
      %1138 = vst [vmem:[%s1137] ss:$2 sm:$0xff] %v1128
      %v1139 = vld.sshfl [vmem:[#allocation1] sm:$0xff pattern:$0x75316420]
      %v1140 = vld.sshfl [vmem:[#allocation1 + $0x8] sm:$0xff pattern:$0x75316420]
      %v1141 = vld.sshfl [vmem:[#allocation1 + $0x10] sm:$0xff pattern:$0x75316420]
      %1142 = vrot.lane.b32.xlu0 %v1139, 2
      %v1143 = vpop.permute.xlu0 %1142
      %1144 = vrot.lane.b32.xlu0 %v1140, 2
      %v1145 = vpop.permute.xlu0 %1144
      %1146 = vrot.lane.b32.xlu0 %v1141, 2
      %v1147 = vpop.permute.xlu0 %1146
      %vm1148 = vcmask 15360
      %v1149 = vsel %vm1148, %v1143, %v1145
      %v1150 = vsel %vm1148, %v1145, %v1147
      %v1153 = vmul.f32 %v1132, %v1149
      %v1154 = vmul.f32 %v1132, %v1150
      %v1155 = vadd.f32 %v1108, %v1153
      %v1156 = vadd.f32 %v1109, %v1154
      %v1157 = vld [vmem:[%s354 + $0x8] sm:$0xff]
      %v1158 = vld [vmem:[%s354 + $0x10] sm:$0xf]
      %s1159 = scalar_lea.vmem %s1, 20
      %v1160 = vld [vmem:[%s1159] ss:$8 sm:$0x3]
      %v1161 = vld [vmem:[%s1019] sm:$0xf]
      %v1163 = vperm.slane %v1160, 0
      %v1164 = vperm.slane %v1160, 1
      %v1165 = vrot.slane %v1164, 4
      %v1166 = vsel %vm390, %v1163, %v1165
      %1167 = vrot.lane.b32.xlu0 %v1166, 38
      %v1168 = vpop.permute.xlu0 %1167
      %v1169 = vrot.slane %v1168, 4
      %vm1170 = vcmask 310272
      %v1171 = vsel %vm1170, %v1169, %v1168
      %v1174 = vmul.f32 %v1157, %v1171
      %v1175 = vmul.f32 %v1158, %v1169
      %1177 = vset.pattern.permute.xlu0 3
      %1178 = vperm.xlu0 %1177, %v1161
      %v1179 = vpop.permute.xlu0 %1178
      %1183 = vst [vmem:[#allocation1] ss:$2 sm:$0xff] %v1174
      %s1184 = scalar_lea.vmem [#allocation1], 16
      %1185 = vst [vmem:[%s1184] ss:$2 sm:$0xff] %v1175
      %v1186 = vld.sshfl [vmem:[#allocation1] sm:$0xff pattern:$0x75316420]
      %v1187 = vld.sshfl [vmem:[#allocation1 + $0x8] sm:$0xff pattern:$0x75316420]
      %v1188 = vld.sshfl [vmem:[#allocation1 + $0x10] sm:$0xff pattern:$0x75316420]
      %1189 = vrot.lane.b32.xlu0 %v1186, 90
      %v1190 = vpop.permute.xlu0 %1189
      %1191 = vrot.lane.b32.xlu0 %v1187, 90
      %v1192 = vpop.permute.xlu0 %1191
      %1193 = vrot.lane.b32.xlu0 %v1188, 90
      %v1194 = vpop.permute.xlu0 %1193
      %vm1195 = vcmask 736256
      %v1196 = vsel %vm1195, %v1190, %v1192
      %v1197 = vsel %vm1195, %v1192, %v1194
      %v1200 = vmul.f32 %v1179, %v1196
      %v1201 = vmul.f32 %v1179, %v1197
      %v1202 = vadd.f32 %v1155, %v1200
      %v1203 = vadd.f32 %v1156, %v1201
      %s1204 = scalar_lea.vmem %s1, 21
      %v1205 = vld [vmem:[%s1204] ss:$8 sm:$0x3]
      %v1206 = vld [vmem:[%s1019] sm:$0xf]
      %v1208 = vperm.slane %v1205, 0
      %v1209 = vperm.slane %v1205, 1
      %v1210 = vrot.slane %v1209, 4
      %v1211 = vsel %vm390, %v1208, %v1210
      %1212 = vrot.lane.b32.xlu0 %v1211, 50
      %v1213 = vpop.permute.xlu0 %1212
      %v1214 = vrot.slane %v1213, 4
      %v1215 = vsel %vm636, %v1214, %v1213
      %v1218 = vmul.f32 %v360, %v1215
      %v1219 = vmul.f32 %v361, %v1214
      %1221 = vset.pattern.permute.xlu0 4
      %1222 = vperm.xlu0 %1221, %v1206
      %v1223 = vpop.permute.xlu0 %1222
      %1227 = vst [vmem:[#allocation1] ss:$2 sm:$0xff] %v1218
      %s1228 = scalar_lea.vmem [#allocation1], 16
      %1229 = vst [vmem:[%s1228] ss:$2 sm:$0xff] %v1219
      %v1230 = vld.sshfl [vmem:[#allocation1] sm:$0xff pattern:$0x75316420]
      %v1231 = vld.sshfl [vmem:[#allocation1 + $0x8] sm:$0xff pattern:$0x75316420]
      %v1232 = vld.sshfl [vmem:[#allocation1 + $0x10] sm:$0xff pattern:$0x75316420]
      %1233 = vrot.lane.b32.xlu0 %v1230, 78
      %v1234 = vpop.permute.xlu0 %1233
      %1235 = vrot.lane.b32.xlu0 %v1231, 78
      %v1236 = vpop.permute.xlu0 %1235
      %1237 = vrot.lane.b32.xlu0 %v1232, 78
      %v1238 = vpop.permute.xlu0 %1237
      %v1239 = vsel %vm383, %v1234, %v1236
      %v1240 = vsel %vm383, %v1236, %v1238
      %v1243 = vmul.f32 %v1223, %v1239
      %v1244 = vmul.f32 %v1223, %v1240
      %v1245 = vadd.f32 %v1202, %v1243
      %v1246 = vadd.f32 %v1203, %v1244
      %v1247 = vld [vmem:[%s354 + $0x8] sm:$0xff]
      %v1248 = vld [vmem:[%s354 + $0x10] sm:$0xf]
      %s1249 = scalar_lea.vmem %s1, 22
      %v1250 = vld [vmem:[%s1249] ss:$8 sm:$0x3]
      %v1251 = vld [vmem:[%s1019] sm:$0xf]
      %v1253 = vperm.slane %v1250, 0
      %v1254 = vperm.slane %v1250, 1
      %v1255 = vrot.slane %v1254, 4
      %v1256 = vsel %vm390, %v1253, %v1255
      %1257 = vrot.lane.b32.xlu0 %v1256, 62
      %v1258 = vpop.permute.xlu0 %1257
      %v1259 = vrot.slane %v1258, 4
      %vm1260 = vcmask 506880
      %v1261 = vsel %vm1260, %v1259, %v1258
      %v1264 = vmul.f32 %v1247, %v1261
      %v1265 = vmul.f32 %v1248, %v1259
      %1267 = vset.pattern.permute.xlu0 5
      %1268 = vperm.xlu0 %1267, %v1251
      %v1269 = vpop.permute.xlu0 %1268
      %1273 = vst [vmem:[#allocation1] ss:$2 sm:$0xff] %v1264
      %s1274 = scalar_lea.vmem [#allocation1], 16
      %1275 = vst [vmem:[%s1274] ss:$2 sm:$0xff] %v1265
      %v1276 = vld.sshfl [vmem:[#allocation1] sm:$0xff pattern:$0x75316420]
      %v1277 = vld.sshfl [vmem:[#allocation1 + $0x8] sm:$0xff pattern:$0x75316420]
      %v1278 = vld.sshfl [vmem:[#allocation1 + $0x10] sm:$0xff pattern:$0x75316420]
      %1279 = vrot.lane.b32.xlu0 %v1276, 66
      %v1280 = vpop.permute.xlu0 %1279
      %1281 = vrot.lane.b32.xlu0 %v1277, 66
      %v1282 = vpop.permute.xlu0 %1281
      %1283 = vrot.lane.b32.xlu0 %v1278, 66
      %v1284 = vpop.permute.xlu0 %1283
      %vm1285 = vcmask 539648
      %v1286 = vsel %vm1285, %v1280, %v1282
      %v1287 = vsel %vm1285, %v1282, %v1284
      %v1290 = vmul.f32 %v1269, %v1286
      %v1291 = vmul.f32 %v1269, %v1287
      %v1292 = vadd.f32 %v1245, %v1290
      %v1293 = vadd.f32 %v1246, %v1291
      %v1294 = vld [vmem:[%s354 + $0xc] sm:$0xff]
      %v1295 = vld [vmem:[%s354 + $0x14] sm:$0xf]
      %s1296 = scalar_lea.vmem %s1, 23
      %v1297 = vld [vmem:[%s1296] ss:$8 sm:$0x3]
      %v1298 = vld [vmem:[%s1019] sm:$0xf]
      %v1300 = vperm.slane %v1297, 0
      %v1301 = vperm.slane %v1297, 1
      %v1302 = vrot.slane %v1301, 4
      %v1303 = vsel %vm390, %v1300, %v1302
      %1304 = vrot.lane.b32.xlu0 %v1303, 102
      %v1305 = vpop.permute.xlu0 %1304
      %v1306 = vrot.slane %v1305, 4
      %v1307 = vsel %vm1029, %v1306, %v1305
      %v1310 = vmul.f32 %v1294, %v1307
      %v1311 = vmul.f32 %v1295, %v1306
      %1313 = vset.pattern.permute.xlu0 6
      %1314 = vperm.xlu0 %1313, %v1298
      %v1315 = vpop.permute.xlu0 %1314
      %1319 = vst [vmem:[#allocation1] ss:$2 sm:$0xff] %v1310
      %s1320 = scalar_lea.vmem [#allocation1], 16
      %1321 = vst [vmem:[%s1320] ss:$2 sm:$0xff] %v1311
      %v1322 = vld.sshfl [vmem:[#allocation1] sm:$0xff pattern:$0x75316420]
      %v1323 = vld.sshfl [vmem:[#allocation1 + $0x8] sm:$0xff pattern:$0x75316420]
      %v1324 = vld.sshfl [vmem:[#allocation1 + $0x10] sm:$0xff pattern:$0x75316420]
      %1325 = vrot.lane.b32.xlu0 %v1322, 26
      %v1326 = vpop.permute.xlu0 %1325
      %1327 = vrot.lane.b32.xlu0 %v1323, 26
      %v1328 = vpop.permute.xlu0 %1327
      %1329 = vrot.lane.b32.xlu0 %v1324, 26
      %v1330 = vpop.permute.xlu0 %1329
      %v1331 = vsel %vm1054, %v1326, %v1328
      %v1332 = vsel %vm1054, %v1328, %v1330
      %v1335 = vmul.f32 %v1315, %v1331
      %v1336 = vmul.f32 %v1315, %v1332
      %v1337 = vadd.f32 %v1292, %v1335
      %v1338 = vadd.f32 %v1293, %v1336
      %v1339 = vld [vmem:[%s354 + $0xc] sm:$0xff]
      %v1340 = vld [vmem:[%s354 + $0x14] sm:$0xf]
      %s1341 = scalar_lea.vmem %s1, 32
      %v1342 = vld [vmem:[%s1341] ss:$8 sm:$0x3]
      %v1343 = vld [vmem:[%s1019] sm:$0xf]
      %v1345 = vperm.slane %v1342, 0
      %v1346 = vperm.slane %v1342, 1
      %v1347 = vrot.slane %v1346, 4
      %v1348 = vsel %vm390, %v1345, %v1347
      %1349 = vrot.lane.b32.xlu0 %v1348, 114
      %v1350 = vpop.permute.xlu0 %1349
      %v1351 = vrot.slane %v1350, 4
      %v1352 = vsel %vm1076, %v1351, %v1350
      %v1355 = vmul.f32 %v1339, %v1352
      %v1356 = vmul.f32 %v1340, %v1351
      %1358 = vset.pattern.permute.xlu0 7
      %1359 = vperm.xlu0 %1358, %v1343
      %v1360 = vpop.permute.xlu0 %1359
      %1364 = vst [vmem:[#allocation1] ss:$2 sm:$0xff] %v1355
      %s1365 = scalar_lea.vmem [#allocation1], 16
      %1366 = vst [vmem:[%s1365] ss:$2 sm:$0xff] %v1356
      %v1367 = vld.sshfl [vmem:[#allocation1] sm:$0xff pattern:$0x75316420]
      %v1368 = vld.sshfl [vmem:[#allocation1 + $0x8] sm:$0xff pattern:$0x75316420]
      %v1369 = vld.sshfl [vmem:[#allocation1 + $0x10] sm:$0xff pattern:$0x75316420]
      %1370 = vrot.lane.b32.xlu0 %v1367, 14
      %v1371 = vpop.permute.xlu0 %1370
      %1372 = vrot.lane.b32.xlu0 %v1368, 14
      %v1373 = vpop.permute.xlu0 %1372
      %1374 = vrot.lane.b32.xlu0 %v1369, 14
      %v1375 = vpop.permute.xlu0 %1374
      %v1376 = vsel %vm1101, %v1371, %v1373
      %v1377 = vsel %vm1101, %v1373, %v1375
      %v1380 = vmul.f32 %v1360, %v1376
      %v1381 = vmul.f32 %v1360, %v1377
      %v1382 = vadd.f32 %v1337, %v1380
      %v1383 = vadd.f32 %v1338, %v1381
      %v1384 = vld [vmem:[%s354 + $0xc] sm:$0xff]
      %v1385 = vld [vmem:[%s354 + $0x14] sm:$0xf]
      %s1386 = scalar_lea.vmem %s1, 33
      %v1387 = vld [vmem:[%s1386] ss:$8 sm:$0x3]
      %v1388 = vld [vmem:[%s1019] sm:$0xf]
      %v1390 = vperm.slane %v1387, 0
      %v1391 = vperm.slane %v1387, 1
      %v1392 = vrot.slane %v1391, 4
      %v1393 = vsel %vm390, %v1390, %v1392
      %1394 = vrot.lane.b32.xlu0 %v1393, 126
      %v1395 = vpop.permute.xlu0 %1394
      %v1396 = vrot.slane %v1395, 4
      %v1397 = vsel %vm1123, %v1396, %v1395
      %v1400 = vmul.f32 %v1384, %v1397
      %v1401 = vmul.f32 %v1385, %v1396
      %1403 = vset.pattern.permute.xlu0 8
      %1404 = vperm.xlu0 %1403, %v1388
      %v1405 = vpop.permute.xlu0 %1404
      %1409 = vst [vmem:[#allocation1] ss:$2 sm:$0xff] %v1400
      %s1410 = scalar_lea.vmem [#allocation1], 16
      %1411 = vst [vmem:[%s1410] ss:$2 sm:$0xff] %v1401
      %v1412 = vld.sshfl [vmem:[#allocation1] sm:$0xff pattern:$0x75316420]
      %v1413 = vld.sshfl [vmem:[#allocation1 + $0x8] sm:$0xff pattern:$0x75316420]
      %v1414 = vld.sshfl [vmem:[#allocation1 + $0x10] sm:$0xff pattern:$0x75316420]
      %1415 = vrot.lane.b32.xlu0 %v1412, 2
      %v1416 = vpop.permute.xlu0 %1415
      %1417 = vrot.lane.b32.xlu0 %v1413, 2
      %v1418 = vpop.permute.xlu0 %1417
      %1419 = vrot.lane.b32.xlu0 %v1414, 2
      %v1420 = vpop.permute.xlu0 %1419
      %v1421 = vsel %vm1148, %v1416, %v1418
      %v1422 = vsel %vm1148, %v1418, %v1420
      %v1425 = vmul.f32 %v1405, %v1421
      %v1426 = vmul.f32 %v1405, %v1422
      %v1427 = vadd.f32 %v1382, %v1425
      %v1428 = vadd.f32 %v1383, %v1426
      %s1429 = scalar_lea.vmem %s5, 4
      %v1430 = vld [vmem:[%s1429] sm:$0xf]
      %1432 = vset.pattern.permute.xlu0 0
      %1433 = vperm.xlu0 %1432, %v1430
      %v1434 = vpop.permute.xlu0 %1433
      %v1436 = vadd.f32 %v1427, %v1434
      %v1437 = vadd.f32 %v1428, %v1434
      %v1438 = vmax.f32 %v1436, 0.0
      %v1439 = vmax.f32 %v1437, 0.0
      %s1440 = scalar_lea.vmem %s6, 8
      %v1441 = vld [vmem:[%s1440] sm:$0xff]
      %s1442 = scalar_lea.vmem %s7, 8
      %v1443 = vld [vmem:[%s1442] sm:$0xff]
      %1445 = vset.pattern.permute.xlu0 0
      %1446 = vperm.xlu0 %1445, %v1443
      %v1447 = vpop.permute.xlu0 %1446
      %v1450 = vsel %vm386, %v1441, 0
      %v1453 = vsel %vm390, %v1438, 0
      %v1456 = vsel %vm390, %v1439, 0
      %1458 = vmatpush.msra.mxu0 0.0
      %1459 = vmatpush.msra.mxu0 0.0
      %1460 = vmatpush.msra.mxu0 0.0
      %1461 = vmatpush.msra.mxu0 0.0
      %1462 = vmatpush.msra.mxu0 0.0
      %1463 = vmatpush.msra.mxu0 0.0
      %1464 = vmatpush.msra.mxu0 0.0
      %1465 = vmatpush.msra.mxu0 0.0
      %1466 = vmatpush.msra.mxu0 0.0
      %1467 = vmatpush.msra.mxu0 0.0
      %1468 = vmatpush.msra.mxu0 0.0
      %1469 = vmatpush.msra.mxu0 0.0
      %1470 = vmatpush.msra.mxu0 0.0
      %1471 = vmatpush.msra.mxu0 0.0
      %1472 = vmatpush.msra.mxu0 0.0
      %1473 = vmatpush.msra.mxu0 %v1453
      %1474 = vmatmul.f32.gmra.mxu0 %v1450
      %v1475 = vpop.f32.mrf.mxu0
      %v1476 = vadd.f32 %v1447, %v1475
      %1477 = vdwg.mxu0
      %1478 = vmatpush.msra.mxu0 0.0
      %1479 = vmatpush.msra.mxu0 0.0
      %1480 = vmatpush.msra.mxu0 0.0
      %1481 = vmatpush.msra.mxu0 0.0
      %1482 = vmatpush.msra.mxu0 0.0
      %1483 = vmatpush.msra.mxu0 0.0
      %1484 = vmatpush.msra.mxu0 0.0
      %1485 = vmatpush.msra.mxu0 0.0
      %1486 = vmatpush.msra.mxu0 0.0
      %1487 = vmatpush.msra.mxu0 0.0
      %1488 = vmatpush.msra.mxu0 0.0
      %1489 = vmatpush.msra.mxu0 0.0
      %1490 = vmatpush.msra.mxu0 0.0
      %1491 = vmatpush.msra.mxu0 0.0
      %1492 = vmatpush.msra.mxu0 0.0
      %1493 = vmatpush.msra.mxu0 %v1456
      %1494 = vmatmul.f32.gmra.mxu0 %v1450
      %v1495 = vpop.f32.mrf.mxu0
      %v1496 = vadd.f32 %v1447, %v1495
      %1497 = vdwg.mxu0
      %v1498 = vmax.f32 %v1476, 0.0
      %v1499 = vmax.f32 %v1496, 0.0
      %v1500 = vld [vmem:[%s8] sm:$0xff]
      %1502 = vrot.lane.b32.xlu0 %v1500, 112
      %v1503 = vpop.permute.xlu0 %1502
      %v1504 = vsel %vm929, %v1503, 0
      %1506 = vmatpush.msra.mxu0 0.0
      %1507 = vmatpush.msra.mxu0 0.0
      %1508 = vmatpush.msra.mxu0 0.0
      %1509 = vmatpush.msra.mxu0 0.0
      %1510 = vmatpush.msra.mxu0 0.0
      %1511 = vmatpush.msra.mxu0 0.0
      %1512 = vmatpush.msra.mxu0 0.0
      %1513 = vmatpush.msra.mxu0 0.0
      %1514 = vmatpush.msra.mxu0 0.0
      %1515 = vmatpush.msra.mxu0 0.0
      %1516 = vmatpush.msra.mxu0 0.0
      %1517 = vmatpush.msra.mxu0 0.0
      %1518 = vmatpush.msra.mxu0 0.0
      %1519 = vmatpush.msra.mxu0 0.0
      %1520 = vmatpush.msra.mxu0 0.0
      %1521 = vmatpush.msra.mxu0 %v1498
      %1522 = vmatmul.f32.gmra.mxu0 %v1504
      %v1523 = vpop.f32.mrf.mxu0
      %v1524 = vadd.f32 0.0, %v1523
      %1525 = vdwg.mxu0
      %1526 = vmatpush.msra.mxu0 0.0
      %1527 = vmatpush.msra.mxu0 0.0
      %1528 = vmatpush.msra.mxu0 0.0
      %1529 = vmatpush.msra.mxu0 0.0
      %1530 = vmatpush.msra.mxu0 0.0
      %1531 = vmatpush.msra.mxu0 0.0
      %1532 = vmatpush.msra.mxu0 0.0
      %1533 = vmatpush.msra.mxu0 0.0
      %1534 = vmatpush.msra.mxu0 0.0
      %1535 = vmatpush.msra.mxu0 0.0
      %1536 = vmatpush.msra.mxu0 0.0
      %1537 = vmatpush.msra.mxu0 0.0
      %1538 = vmatpush.msra.mxu0 0.0
      %1539 = vmatpush.msra.mxu0 0.0
      %1540 = vmatpush.msra.mxu0 0.0
      %1541 = vmatpush.msra.mxu0 %v1499
      %1542 = vmatmul.f32.gmra.mxu0 %v1504
      %v1543 = vpop.f32.mrf.mxu0
      %v1544 = vadd.f32 0.0, %v1543
      %1545 = vdwg.mxu0
      %v1546 = vadd.f32 %v993, %v1524
      %v1547 = vadd.f32 %v1013, %v1544
      %v1548 = vld [vmem:[%s354] sm:$0xff]
      %s1549 = scalar_lea.vmem %s1, 34
      %v1550 = vld [vmem:[%s1549] ss:$8 sm:$0x3]
      %s1551 = scalar_lea.vmem %s4, 8
      %v1552 = vld [vmem:[%s1551] sm:$0xf]
      %v1554 = vperm.slane %v1550, 0
      %v1555 = vperm.slane %v1550, 1
      %v1556 = vrot.slane %v1555, 4
      %v1557 = vsel %vm390, %v1554, %v1556
      %v1559 = vmul.f32 %v1548, %v1557
      %1561 = vset.pattern.permute.xlu0 0
      %1562 = vperm.xlu0 %1561, %v1552
      %v1563 = vpop.permute.xlu0 %1562
      %1566 = vst [vmem:[#allocation1] ss:$2 sm:$0xff] %v1559
      %v1567 = vld.sshfl [vmem:[#allocation1] sm:$0xff pattern:$0x75316420]
      %v1568 = vld.sshfl [vmem:[#allocation1 + $0x8] sm:$0xff pattern:$0x75316420]
      %v1571 = vmul.f32 %v1563, %v1567
      %v1572 = vmul.f32 %v1563, %v1568
      %v1573 = vadd.f32 %v1571, 0.0
      %v1574 = vadd.f32 %v1572, 0.0
      %v1575 = vld [vmem:[%s354] sm:$0xff]
      %v1576 = vld [vmem:[%s354 + $0x8] sm:$0xf]
      %s1577 = scalar_lea.vmem %s1, 35
      %v1578 = vld [vmem:[%s1577] ss:$8 sm:$0x3]
      %v1579 = vld [vmem:[%s1551] sm:$0xf]
      %v1581 = vperm.slane %v1578, 0
      %v1582 = vperm.slane %v1578, 1
      %v1583 = vrot.slane %v1582, 4
      %v1584 = vsel %vm390, %v1581, %v1583
      %1585 = vrot.lane.b32.xlu0 %v1584, 18
      %v1586 = vpop.permute.xlu0 %1585
      %v1587 = vrot.slane %v1586, 4
      %v1588 = vsel %vm776, %v1587, %v1586
      %v1591 = vmul.f32 %v1575, %v1588
      %v1592 = vmul.f32 %v1576, %v1587
      %1594 = vset.pattern.permute.xlu0 1
      %1595 = vperm.xlu0 %1594, %v1579
      %v1596 = vpop.permute.xlu0 %1595
      %1600 = vst [vmem:[#allocation1] ss:$2 sm:$0xff] %v1591
      %s1601 = scalar_lea.vmem [#allocation1], 16
      %1602 = vst [vmem:[%s1601] ss:$2 sm:$0xff] %v1592
      %v1603 = vld.sshfl [vmem:[#allocation1] sm:$0xff pattern:$0x75316420]
      %v1604 = vld.sshfl [vmem:[#allocation1 + $0x8] sm:$0xff pattern:$0x75316420]
      %v1605 = vld.sshfl [vmem:[#allocation1 + $0x10] sm:$0xff pattern:$0x75316420]
      %1606 = vrot.lane.b32.xlu0 %v1603, 110
      %v1607 = vpop.permute.xlu0 %1606
      %1608 = vrot.lane.b32.xlu0 %v1604, 110
      %v1609 = vpop.permute.xlu0 %1608
      %1610 = vrot.lane.b32.xlu0 %v1605, 110
      %v1611 = vpop.permute.xlu0 %1610
      %v1612 = vsel %vm801, %v1607, %v1609
      %v1613 = vsel %vm801, %v1609, %v1611
      %v1616 = vmul.f32 %v1596, %v1612
      %v1617 = vmul.f32 %v1596, %v1613
      %v1618 = vadd.f32 %v1573, %v1616
      %v1619 = vadd.f32 %v1574, %v1617
      %v1620 = vld [vmem:[%s354] sm:$0xff]
      %v1621 = vld [vmem:[%s354 + $0x8] sm:$0xf]
      %s1622 = scalar_lea.vmem %s1, 36
      %v1623 = vld [vmem:[%s1622] ss:$8 sm:$0x3]
      %v1624 = vld [vmem:[%s1551] sm:$0xf]
      %v1626 = vperm.slane %v1623, 0
      %v1627 = vperm.slane %v1623, 1
      %v1628 = vrot.slane %v1627, 4
      %v1629 = vsel %vm390, %v1626, %v1628
      %1630 = vrot.lane.b32.xlu0 %v1629, 36
      %v1631 = vpop.permute.xlu0 %1630
      %v1632 = vrot.slane %v1631, 4
      %vm1633 = vcmask 293888
      %v1634 = vsel %vm1633, %v1632, %v1631
      %v1637 = vmul.f32 %v1620, %v1634
      %v1638 = vmul.f32 %v1621, %v1632
      %1640 = vset.pattern.permute.xlu0 2
      %1641 = vperm.xlu0 %1640, %v1624
      %v1642 = vpop.permute.xlu0 %1641
      %1646 = vst [vmem:[#allocation1] ss:$2 sm:$0xff] %v1637
      %s1647 = scalar_lea.vmem [#allocation1], 16
      %1648 = vst [vmem:[%s1647] ss:$2 sm:$0xff] %v1638
      %v1649 = vld.sshfl [vmem:[#allocation1] sm:$0xff pattern:$0x75316420]
      %v1650 = vld.sshfl [vmem:[#allocation1 + $0x8] sm:$0xff pattern:$0x75316420]
      %v1651 = vld.sshfl [vmem:[#allocation1 + $0x10] sm:$0xff pattern:$0x75316420]
      %1652 = vrot.lane.b32.xlu0 %v1649, 92
      %v1653 = vpop.permute.xlu0 %1652
      %1654 = vrot.lane.b32.xlu0 %v1650, 92
      %v1655 = vpop.permute.xlu0 %1654
      %1656 = vrot.lane.b32.xlu0 %v1651, 92
      %v1657 = vpop.permute.xlu0 %1656
      %vm1658 = vcmask 752640
      %v1659 = vsel %vm1658, %v1653, %v1655
      %v1660 = vsel %vm1658, %v1655, %v1657
      %v1663 = vmul.f32 %v1642, %v1659
      %v1664 = vmul.f32 %v1642, %v1660
      %v1665 = vadd.f32 %v1618, %v1663
      %v1666 = vadd.f32 %v1619, %v1664
      %v1667 = vld [vmem:[%s354 + $0x8] sm:$0xff]
      %v1668 = vld [vmem:[%s354 + $0x10] sm:$0xf]
      %s1669 = scalar_lea.vmem %s1, 37
      %v1670 = vld [vmem:[%s1669] ss:$8 sm:$0x3]
      %v1671 = vld [vmem:[%s1551] sm:$0xf]
      %v1673 = vperm.slane %v1670, 0
      %v1674 = vperm.slane %v1670, 1
      %v1675 = vrot.slane %v1674, 4
      %v1676 = vsel %vm390, %v1673, %v1675
      %1677 = vrot.lane.b32.xlu0 %v1676, 32
      %v1678 = vpop.permute.xlu0 %1677
      %v1679 = vrot.slane %v1678, 4
      %vm1680 = vcmask 261120
      %v1681 = vsel %vm1680, %v1679, %v1678
      %v1684 = vmul.f32 %v1667, %v1681
      %v1685 = vmul.f32 %v1668, %v1679
      %1687 = vset.pattern.permute.xlu0 3
      %1688 = vperm.xlu0 %1687, %v1671
      %v1689 = vpop.permute.xlu0 %1688
      %1693 = vst [vmem:[#allocation1] ss:$2 sm:$0xff] %v1684
      %s1694 = scalar_lea.vmem [#allocation1], 16
      %1695 = vst [vmem:[%s1694] ss:$2 sm:$0xff] %v1685
      %v1696 = vld.sshfl [vmem:[#allocation1] sm:$0xff pattern:$0x75316420]
      %v1697 = vld.sshfl [vmem:[#allocation1 + $0x8] sm:$0xff pattern:$0x75316420]
      %v1698 = vld.sshfl [vmem:[#allocation1 + $0x10] sm:$0xff pattern:$0x75316420]
      %1699 = vrot.lane.b32.xlu0 %v1696, 96
      %v1700 = vpop.permute.xlu0 %1699
      %1701 = vrot.lane.b32.xlu0 %v1697, 96
      %v1702 = vpop.permute.xlu0 %1701
      %1703 = vrot.lane.b32.xlu0 %v1698, 96
      %v1704 = vpop.permute.xlu0 %1703
      %vm1705 = vcmask 785408
      %v1706 = vsel %vm1705, %v1700, %v1702
      %v1707 = vsel %vm1705, %v1702, %v1704
      %v1710 = vmul.f32 %v1689, %v1706
      %v1711 = vmul.f32 %v1689, %v1707
      %v1712 = vadd.f32 %v1665, %v1710
      %v1713 = vadd.f32 %v1666, %v1711
      %s1714 = scalar_lea.vmem %s1, 38
      %v1715 = vld [vmem:[%s1714] ss:$8 sm:$0x3]
      %v1716 = vld [vmem:[%s1551] sm:$0xf]
      %v1718 = vperm.slane %v1715, 0
      %v1719 = vperm.slane %v1715, 1
      %v1720 = vrot.slane %v1719, 4
      %v1721 = vsel %vm390, %v1718, %v1720
      %1722 = vrot.lane.b32.xlu0 %v1721, 50
      %v1723 = vpop.permute.xlu0 %1722
      %v1724 = vrot.slane %v1723, 4
      %v1725 = vsel %vm636, %v1724, %v1723
      %v1728 = vmul.f32 %v360, %v1725
      %v1729 = vmul.f32 %v361, %v1724
      %1731 = vset.pattern.permute.xlu0 4
      %1732 = vperm.xlu0 %1731, %v1716
      %v1733 = vpop.permute.xlu0 %1732
      %1737 = vst [vmem:[#allocation1] ss:$2 sm:$0xff] %v1728
      %s1738 = scalar_lea.vmem [#allocation1], 16
      %1739 = vst [vmem:[%s1738] ss:$2 sm:$0xff] %v1729
      %v1740 = vld.sshfl [vmem:[#allocation1] sm:$0xff pattern:$0x75316420]
      %v1741 = vld.sshfl [vmem:[#allocation1 + $0x8] sm:$0xff pattern:$0x75316420]
      %v1742 = vld.sshfl [vmem:[#allocation1 + $0x10] sm:$0xff pattern:$0x75316420]
      %1743 = vrot.lane.b32.xlu0 %v1740, 78
      %v1744 = vpop.permute.xlu0 %1743
      %1745 = vrot.lane.b32.xlu0 %v1741, 78
      %v1746 = vpop.permute.xlu0 %1745
      %1747 = vrot.lane.b32.xlu0 %v1742, 78
      %v1748 = vpop.permute.xlu0 %1747
      %v1749 = vsel %vm383, %v1744, %v1746
      %v1750 = vsel %vm383, %v1746, %v1748
      %v1753 = vmul.f32 %v1733, %v1749
      %v1754 = vmul.f32 %v1733, %v1750
      %v1755 = vadd.f32 %v1712, %v1753
      %v1756 = vadd.f32 %v1713, %v1754
      %v1757 = vld [vmem:[%s354 + $0x8] sm:$0xff]
      %v1758 = vld [vmem:[%s354 + $0x10] sm:$0xf]
      %s1759 = scalar_lea.vmem %s1, 39
      %v1760 = vld [vmem:[%s1759] ss:$8 sm:$0x3]
      %v1761 = vld [vmem:[%s1551] sm:$0xf]
      %v1763 = vperm.slane %v1760, 0
      %v1764 = vperm.slane %v1760, 1
      %v1765 = vrot.slane %v1764, 4
      %v1766 = vsel %vm390, %v1763, %v1765
      %1767 = vrot.lane.b32.xlu0 %v1766, 68
      %v1768 = vpop.permute.xlu0 %1767
      %v1769 = vrot.slane %v1768, 4
      %vm1770 = vcmask 556032
      %v1771 = vsel %vm1770, %v1769, %v1768
      %v1774 = vmul.f32 %v1757, %v1771
      %v1775 = vmul.f32 %v1758, %v1769
      %1777 = vset.pattern.permute.xlu0 5
      %1778 = vperm.xlu0 %1777, %v1761
      %v1779 = vpop.permute.xlu0 %1778
      %1783 = vst [vmem:[#allocation1] ss:$2 sm:$0xff] %v1774
      %s1784 = scalar_lea.vmem [#allocation1], 16
      %1785 = vst [vmem:[%s1784] ss:$2 sm:$0xff] %v1775
      %v1786 = vld.sshfl [vmem:[#allocation1] sm:$0xff pattern:$0x75316420]
      %v1787 = vld.sshfl [vmem:[#allocation1 + $0x8] sm:$0xff pattern:$0x75316420]
      %v1788 = vld.sshfl [vmem:[#allocation1 + $0x10] sm:$0xff pattern:$0x75316420]
      %1789 = vrot.lane.b32.xlu0 %v1786, 60
      %v1790 = vpop.permute.xlu0 %1789
      %1791 = vrot.lane.b32.xlu0 %v1787, 60
      %v1792 = vpop.permute.xlu0 %1791
      %1793 = vrot.lane.b32.xlu0 %v1788, 60
      %v1794 = vpop.permute.xlu0 %1793
      %vm1795 = vcmask 490496
      %v1796 = vsel %vm1795, %v1790, %v1792
      %v1797 = vsel %vm1795, %v1792, %v1794
      %v1800 = vmul.f32 %v1779, %v1796
      %v1801 = vmul.f32 %v1779, %v1797
      %v1802 = vadd.f32 %v1755, %v1800
      %v1803 = vadd.f32 %v1756, %v1801
      %v1804 = vld [vmem:[%s354 + $0x10] sm:$0xff]
      %v1805 = vld [vmem:[%s354 + $0x18] sm:$0xf]
      %s1806 = scalar_lea.vmem %s1, 48
      %v1807 = vld [vmem:[%s1806] ss:$8 sm:$0x3]
      %v1808 = vld [vmem:[%s1551] sm:$0xf]
      %v1810 = vperm.slane %v1807, 0
      %v1811 = vperm.slane %v1807, 1
      %v1812 = vrot.slane %v1811, 4
      %v1813 = vsel %vm390, %v1810, %v1812
      %1814 = vrot.lane.b32.xlu0 %v1813, 64
      %v1815 = vpop.permute.xlu0 %1814
      %v1816 = vrot.slane %v1815, 4
      %vm1817 = vcmask 523264
      %v1818 = vsel %vm1817, %v1816, %v1815
      %v1821 = vmul.f32 %v1804, %v1818
      %v1822 = vmul.f32 %v1805, %v1816
      %1824 = vset.pattern.permute.xlu0 6
      %1825 = vperm.xlu0 %1824, %v1808
      %v1826 = vpop.permute.xlu0 %1825
      %1830 = vst [vmem:[#allocation1] ss:$2 sm:$0xff] %v1821
      %s1831 = scalar_lea.vmem [#allocation1], 16
      %1832 = vst [vmem:[%s1831] ss:$2 sm:$0xff] %v1822
      %v1833 = vld.sshfl [vmem:[#allocation1] sm:$0xff pattern:$0x75316420]
      %v1834 = vld.sshfl [vmem:[#allocation1 + $0x8] sm:$0xff pattern:$0x75316420]
      %v1835 = vld.sshfl [vmem:[#allocation1 + $0x10] sm:$0xff pattern:$0x75316420]
      %1836 = vrot.lane.b32.xlu0 %v1833, 64
      %v1837 = vpop.permute.xlu0 %1836
      %1838 = vrot.lane.b32.xlu0 %v1834, 64
      %v1839 = vpop.permute.xlu0 %1838
      %1840 = vrot.lane.b32.xlu0 %v1835, 64
      %v1841 = vpop.permute.xlu0 %1840
      %v1842 = vsel %vm1817, %v1837, %v1839
      %v1843 = vsel %vm1817, %v1839, %v1841
      %v1846 = vmul.f32 %v1826, %v1842
      %v1847 = vmul.f32 %v1826, %v1843
      %v1848 = vadd.f32 %v1802, %v1846
      %v1849 = vadd.f32 %v1803, %v1847
      %v1850 = vld [vmem:[%s354 + $0x10] sm:$0xff]
      %v1851 = vld [vmem:[%s354 + $0x18] sm:$0xf]
      %s1852 = scalar_lea.vmem %s1, 49
      %v1853 = vld [vmem:[%s1852] ss:$8 sm:$0x3]
      %v1854 = vld [vmem:[%s1551] sm:$0xf]
      %v1856 = vperm.slane %v1853, 0
      %v1857 = vperm.slane %v1853, 1
      %v1858 = vrot.slane %v1857, 4
      %v1859 = vsel %vm390, %v1856, %v1858
      %1860 = vrot.lane.b32.xlu0 %v1859, 82
      %v1861 = vpop.permute.xlu0 %1860
      %v1862 = vrot.slane %v1861, 4
      %v1863 = vsel %vm497, %v1862, %v1861
      %v1866 = vmul.f32 %v1850, %v1863
      %v1867 = vmul.f32 %v1851, %v1862
      %1869 = vset.pattern.permute.xlu0 7
      %1870 = vperm.xlu0 %1869, %v1854
      %v1871 = vpop.permute.xlu0 %1870
      %1875 = vst [vmem:[#allocation1] ss:$2 sm:$0xff] %v1866
      %s1876 = scalar_lea.vmem [#allocation1], 16
      %1877 = vst [vmem:[%s1876] ss:$2 sm:$0xff] %v1867
      %v1878 = vld.sshfl [vmem:[#allocation1] sm:$0xff pattern:$0x75316420]
      %v1879 = vld.sshfl [vmem:[#allocation1 + $0x8] sm:$0xff pattern:$0x75316420]
      %v1880 = vld.sshfl [vmem:[#allocation1 + $0x10] sm:$0xff pattern:$0x75316420]
      %1881 = vrot.lane.b32.xlu0 %v1878, 46
      %v1882 = vpop.permute.xlu0 %1881
      %1883 = vrot.lane.b32.xlu0 %v1879, 46
      %v1884 = vpop.permute.xlu0 %1883
      %1885 = vrot.lane.b32.xlu0 %v1880, 46
      %v1886 = vpop.permute.xlu0 %1885
      %v1887 = vsel %vm522, %v1882, %v1884
      %v1888 = vsel %vm522, %v1884, %v1886
      %v1891 = vmul.f32 %v1871, %v1887
      %v1892 = vmul.f32 %v1871, %v1888
      %v1893 = vadd.f32 %v1848, %v1891
      %v1894 = vadd.f32 %v1849, %v1892
      %v1895 = vld [vmem:[%s354 + $0x10] sm:$0xff]
      %v1896 = vld [vmem:[%s354 + $0x18] sm:$0xf]
      %s1897 = scalar_lea.vmem %s1, 50
      %v1898 = vld [vmem:[%s1897] ss:$8 sm:$0x3]
      %v1899 = vld [vmem:[%s1551] sm:$0xf]
      %v1901 = vperm.slane %v1898, 0
      %v1902 = vperm.slane %v1898, 1
      %v1903 = vrot.slane %v1902, 4
      %v1904 = vsel %vm390, %v1901, %v1903
      %1905 = vrot.lane.b32.xlu0 %v1904, 100
      %v1906 = vpop.permute.xlu0 %1905
      %v1907 = vrot.slane %v1906, 4
      %vm1908 = vcmask 818176
      %v1909 = vsel %vm1908, %v1907, %v1906
      %v1912 = vmul.f32 %v1895, %v1909
      %v1913 = vmul.f32 %v1896, %v1907
      %1915 = vset.pattern.permute.xlu0 8
      %1916 = vperm.xlu0 %1915, %v1899
      %v1917 = vpop.permute.xlu0 %1916
      %1921 = vst [vmem:[#allocation1] ss:$2 sm:$0xff] %v1912
      %s1922 = scalar_lea.vmem [#allocation1], 16
      %1923 = vst [vmem:[%s1922] ss:$2 sm:$0xff] %v1913
      %v1924 = vld.sshfl [vmem:[#allocation1] sm:$0xff pattern:$0x75316420]
      %v1925 = vld.sshfl [vmem:[#allocation1 + $0x8] sm:$0xff pattern:$0x75316420]
      %v1926 = vld.sshfl [vmem:[#allocation1 + $0x10] sm:$0xff pattern:$0x75316420]
      %1927 = vrot.lane.b32.xlu0 %v1924, 28
      %v1928 = vpop.permute.xlu0 %1927
      %1929 = vrot.lane.b32.xlu0 %v1925, 28
      %v1930 = vpop.permute.xlu0 %1929
      %1931 = vrot.lane.b32.xlu0 %v1926, 28
      %v1932 = vpop.permute.xlu0 %1931
      %vm1933 = vcmask 228352
      %v1934 = vsel %vm1933, %v1928, %v1930
      %v1935 = vsel %vm1933, %v1930, %v1932
      %v1938 = vmul.f32 %v1917, %v1934
      %v1939 = vmul.f32 %v1917, %v1935
      %v1940 = vadd.f32 %v1893, %v1938
      %v1941 = vadd.f32 %v1894, %v1939
      %s1942 = scalar_lea.vmem %s5, 8
      %v1943 = vld [vmem:[%s1942] sm:$0xf]
      %1945 = vset.pattern.permute.xlu0 0
      %1946 = vperm.xlu0 %1945, %v1943
      %v1947 = vpop.permute.xlu0 %1946
      %v1949 = vadd.f32 %v1940, %v1947
      %v1950 = vadd.f32 %v1941, %v1947
      %v1951 = vmax.f32 %v1949, 0.0
      %v1952 = vmax.f32 %v1950, 0.0
      %s1953 = scalar_lea.vmem %s6, 16
      %v1954 = vld [vmem:[%s1953] sm:$0xff]
      %s1955 = scalar_lea.vmem %s7, 16
      %v1956 = vld [vmem:[%s1955] sm:$0xff]
      %1958 = vset.pattern.permute.xlu0 0
      %1959 = vperm.xlu0 %1958, %v1956
      %v1960 = vpop.permute.xlu0 %1959
      %v1963 = vsel %vm386, %v1954, 0
      %v1966 = vsel %vm390, %v1951, 0
      %v1969 = vsel %vm390, %v1952, 0
      %1971 = vmatpush.msra.mxu0 0.0
      %1972 = vmatpush.msra.mxu0 0.0
      %1973 = vmatpush.msra.mxu0 0.0
      %1974 = vmatpush.msra.mxu0 0.0
      %1975 = vmatpush.msra.mxu0 0.0
      %1976 = vmatpush.msra.mxu0 0.0
      %1977 = vmatpush.msra.mxu0 0.0
      %1978 = vmatpush.msra.mxu0 0.0
      %1979 = vmatpush.msra.mxu0 0.0
      %1980 = vmatpush.msra.mxu0 0.0
      %1981 = vmatpush.msra.mxu0 0.0
      %1982 = vmatpush.msra.mxu0 0.0
      %1983 = vmatpush.msra.mxu0 0.0
      %1984 = vmatpush.msra.mxu0 0.0
      %1985 = vmatpush.msra.mxu0 0.0
      %1986 = vmatpush.msra.mxu0 %v1966
      %1987 = vmatmul.f32.gmra.mxu0 %v1963
      %v1988 = vpop.f32.mrf.mxu0
      %v1989 = vadd.f32 %v1960, %v1988
      %1990 = vdwg.mxu0
      %1991 = vmatpush.msra.mxu0 0.0
      %1992 = vmatpush.msra.mxu0 0.0
      %1993 = vmatpush.msra.mxu0 0.0
      %1994 = vmatpush.msra.mxu0 0.0
      %1995 = vmatpush.msra.mxu0 0.0
      %1996 = vmatpush.msra.mxu0 0.0
      %1997 = vmatpush.msra.mxu0 0.0
      %1998 = vmatpush.msra.mxu0 0.0
      %1999 = vmatpush.msra.mxu0 0.0
      %2000 = vmatpush.msra.mxu0 0.0
      %2001 = vmatpush.msra.mxu0 0.0
      %2002 = vmatpush.msra.mxu0 0.0
      %2003 = vmatpush.msra.mxu0 0.0
      %2004 = vmatpush.msra.mxu0 0.0
      %2005 = vmatpush.msra.mxu0 0.0
      %2006 = vmatpush.msra.mxu0 %v1969
      %2007 = vmatmul.f32.gmra.mxu0 %v1963
      %v2008 = vpop.f32.mrf.mxu0
      %v2009 = vadd.f32 %v1960, %v2008
      %2010 = vdwg.mxu0
      %v2011 = vmax.f32 %v1989, 0.0
      %v2012 = vmax.f32 %v2009, 0.0
      %v2013 = vld [vmem:[%s8] sm:$0xff]
      %2015 = vrot.lane.b32.xlu0 %v2013, 104
      %v2016 = vpop.permute.xlu0 %2015
      %v2017 = vsel %vm929, %v2016, 0
      %2019 = vmatpush.msra.mxu0 0.0
      %2020 = vmatpush.msra.mxu0 0.0
      %2021 = vmatpush.msra.mxu0 0.0
      %2022 = vmatpush.msra.mxu0 0.0
      %2023 = vmatpush.msra.mxu0 0.0
      %2024 = vmatpush.msra.mxu0 0.0
      %2025 = vmatpush.msra.mxu0 0.0
      %2026 = vmatpush.msra.mxu0 0.0
      %2027 = vmatpush.msra.mxu0 0.0
      %2028 = vmatpush.msra.mxu0 0.0
      %2029 = vmatpush.msra.mxu0 0.0
      %2030 = vmatpush.msra.mxu0 0.0
      %2031 = vmatpush.msra.mxu0 0.0
      %2032 = vmatpush.msra.mxu0 0.0
      %2033 = vmatpush.msra.mxu0 0.0
      %2034 = vmatpush.msra.mxu0 %v2011
      %2035 = vmatmul.f32.gmra.mxu0 %v2017
      %v2036 = vpop.f32.mrf.mxu0
      %v2037 = vadd.f32 0.0, %v2036
      %2038 = vdwg.mxu0
      %2039 = vmatpush.msra.mxu0 0.0
      %2040 = vmatpush.msra.mxu0 0.0
      %2041 = vmatpush.msra.mxu0 0.0
      %2042 = vmatpush.msra.mxu0 0.0
      %2043 = vmatpush.msra.mxu0 0.0
      %2044 = vmatpush.msra.mxu0 0.0
      %2045 = vmatpush.msra.mxu0 0.0
      %2046 = vmatpush.msra.mxu0 0.0
      %2047 = vmatpush.msra.mxu0 0.0
      %2048 = vmatpush.msra.mxu0 0.0
      %2049 = vmatpush.msra.mxu0 0.0
      %2050 = vmatpush.msra.mxu0 0.0
      %2051 = vmatpush.msra.mxu0 0.0
      %2052 = vmatpush.msra.mxu0 0.0
      %2053 = vmatpush.msra.mxu0 0.0
      %2054 = vmatpush.msra.mxu0 %v2012
      %2055 = vmatmul.f32.gmra.mxu0 %v2017
      %v2056 = vpop.f32.mrf.mxu0
      %v2057 = vadd.f32 0.0, %v2056
      %2058 = vdwg.mxu0
      %v2059 = vadd.f32 %v1546, %v2037
      %v2060 = vadd.f32 %v1547, %v2057
      %v2061 = vld [vmem:[%s9] sm:$0xff]
      %2063 = vset.pattern.permute.xlu0 0
      %2064 = vperm.xlu0 %2063, %v2061
      %v2065 = vpop.permute.xlu0 %2064
      %v2067 = vadd.f32 %v2059, %v2065
      %v2068 = vadd.f32 %v2060, %v2065
      %v2069 = vmax.f32 %v2067, 0.0
      %v2070 = vmax.f32 %v2068, 0.0
      %2071 = vst [vmem:[%s359] sm:$0xff] %v2069
      %2072 = vst [vmem:[%s359 + $0x8] sm:$0xff] %v2070
      %p2073 = scmp.lt.s32.totalorder %s21, 1
      %s2074 = scalar_select %p2073, %s21, 1
      %s2075 = smul.addr %s2074, 2
      %s2076 = smul.addr %s2075, 8
      %s2077 = scalar_lea.vmem %s10, %s2076
      // Predicated region
      $region61: #{dwaspp_lite_forward.1} parent=59 // pred_check
        %p2078 = pneg %p254
      $region62: #{dwaspp_lite_forward.1} parent=59 // pred_check_branch
        %2080 = sbr.rel (%p2078) target = $region64
      $region63: #{dwaspp_lite_forward.1} parent=59 // pred_region
        _
      $region64: #{dwaspp_lite_forward.1} parent=59 // pred_fallthru
        _
    $region60: #{dwaspp_lite_forward.1} parent=5 // pred_fallthru
      _
    %p2081 = scmp.le.s32.totalorder 2, %s16
    // Predicated region
    $region65: #{dwaspp_lite_forward.1} parent=5 // pred_check
      %p2082 = pneg %p2081
    $region66: #{dwaspp_lite_forward.1} parent=5 // pred_check_branch
      %2084 = sbr.rel (%p2082) target = $region68
    $region67: #{dwaspp_lite_forward.1} parent=5 // pred_region
      %s2085 = ssub.s32 %s16, 2
      // Predicated region
      $region69: #{dwaspp_lite_forward.1} parent=67 // pred_check
        %p2086 = pneg %p260
      $region70: #{dwaspp_lite_forward.1} parent=67 // pred_check_branch
        %2088 = sbr.rel (%p2086) target = $region72
      $region71: #{dwaspp_lite_forward.1} parent=67 // pred_region
        %p2089 = scmp.lt.s32.totalorder %s22, 1
        %s2090 = scalar_select %p2089, %s22, 1
        %s2091 = smul.addr %s2090, 2
        %s2092 = smul.addr %s2091, 8
        %s2093 = scalar_lea.vmem %s10, %s2092
      $region72: #{dwaspp_lite_forward.1} parent=67 // pred_fallthru
        _
    $region68: #{dwaspp_lite_forward.1} parent=5 // pred_fallthru
      _
  $region6: #{dwaspp_lite_forward.1} parent=0 // loop_footer
    %s20 = sadd.s32 1, %s16
  $region7: #{dwaspp_lite_forward.1} parent=0 // loop_footer_branch
    %15 = sbr.rel target = $region3
  $region8: #{dwaspp_lite_forward.1} parent=0 // loop_exit
    _

</llo_original>
